<compile_context>
chip_gen: v6e
topology: v6e:2x2x1
jax: 0.10.0
libtpu: 0.0.40
codegen_flags: <defaults>
</compile_context>

<pallas_src>
import functools

import jax
import jax.numpy as jnp
from jax import lax
from jax.experimental import pallas as pl
from jax.experimental.pallas import tpu as pltpu


# ----------------------------------------------------------------------------
# VMEM budgeting helpers.
# ----------------------------------------------------------------------------
def _vmem_capacity_bytes():
    try:
        info = pltpu.get_tpu_info()
        cap = getattr(info, "vmem_capacity_bytes", None)
        if cap:
            return int(cap)
    except Exception:
        pass
    return 64 * 1024 * 1024      # conservative default (v7x per-core VMEM)


def _vmem_limit_bytes():
    # Explicit scoped-VMEM limit with ~15% headroom.
    return int(_vmem_capacity_bytes() * 0.85)


def _round_up(x, m):
    return ((x + m - 1) // m) * m


def _choose_tile(dim, candidates, align):
    """Largest candidate <= round_up(dim, align); pad the operand up to it."""
    dim_a = _round_up(max(dim, 1), align)
    for c in candidates:
        if c <= dim_a:
            return c
    return dim_a


def _choose_t_chunk(T, Bb, E, H, cb, yb):
    """Largest time-chunk whose pipelined footprint fits the VMEM budget."""
    G = 4 * H
    budget = int(_vmem_capacity_bytes() * 0.65)
    fixed = (2 * (E + H) * G * cb        # wih + whh blocks (double-buffered)
             + 2 * G * 4                 # bias
             + 4 * Bb * H * 4            # h0 / c0 input buffers
             + 4 * Bb * H * 4            # hN / cN output buffers
             + 2 * Bb * H * 4)           # h / c scratch
    per_t = Bb * 2 * (E * cb + H * yb)   # x in-block + y out-block (dbl-buf)
    avail = budget - fixed
    t_max = max(1, avail // per_t) if avail > 0 else 1
    for cand in (128, 64, 32, 16, 8):
        if cand <= min(T, t_max) and T % cand == 0:
            return cand
    best = 1
    d = 1
    while d * d <= T:
        if T % d == 0:
            for c in (d, T // d):
                if c <= t_max:
                    best = max(best, c)
        d += 1
    return best


# ----------------------------------------------------------------------------
# Tiled matmul + bias kernel (vocab head).
# ----------------------------------------------------------------------------
def _matmul_bias_kernel(x_ref, w_ref, b_ref, o_ref, acc_ref):
    k = pl.program_id(2)

    @pl.when(k == 0)
    def _():
        acc_ref[...] = jnp.zeros_like(acc_ref)

    acc_ref[...] += jnp.dot(x_ref[...], w_ref[...],
                            preferred_element_type=jnp.float32)

    @pl.when(k == pl.num_programs(2) - 1)
    def _():
        o_ref[...] = (acc_ref[...] + b_ref[...]).astype(o_ref.dtype)


def matmul_bias_pallas(x, w, b, out_dtype=jnp.float32):
    """x: (M, K), w: (K, N), b: (1, N) f32 -> (M, N) out_dtype, f32 accumulate.

    Operands are zero-padded to tile multiples (zeros are exact for matmul+bias)
    and the result is sliced back, so tiles are always (8,128)-aligned.
    """
    M, K = x.shape
    _, N = w.shape
    xb = jnp.dtype(x.dtype).itemsize
    wb = jnp.dtype(w.dtype).itemsize
    ob = jnp.dtype(out_dtype).itemsize
    budget = int(_vmem_capacity_bytes() * 0.65)

    tm = _choose_tile(M, (512, 256, 128, 64, 32, 16, 8), 8)
    tn = _choose_tile(N, (1024, 512, 256, 128), 128)
    tk = _choose_tile(K, (512, 256, 128), 128)

    def fits(tm, tn, tk):
        fp = (2 * tm * tk * xb + 2 * tk * tn * wb + 2 * tn * 4
              + tm * tn * 4 + 2 * tm * tn * ob)
        return fp <= budget

    while not fits(tm, tn, tk):
        if tk > 128:
            tk //= 2
        elif tn > 128:
            tn //= 2
        elif tm > 8:
            tm //= 2
        else:
            break

    Mp, Np, Kp = _round_up(M, tm), _round_up(N, tn), _round_up(K, tk)
    x_p = x if (Mp == M and Kp == K) else jnp.pad(x, ((0, Mp - M), (0, Kp - K)))
    w_p = w if (Kp == K and Np == N) else jnp.pad(w, ((0, Kp - K), (0, Np - N)))
    b_p = b if Np == N else jnp.pad(b, ((0, 0), (0, Np - N)))

    grid = (Mp // tm, Np // tn, Kp // tk)
    out = pl.pallas_call(
        _matmul_bias_kernel,
        out_shape=jax.ShapeDtypeStruct((Mp, Np), out_dtype),
        grid_spec=pltpu.PrefetchScalarGridSpec(
            num_scalar_prefetch=0,
            grid=grid,
            in_specs=[pl.BlockSpec((tm, tk), lambda i, j, k: (i, k)),
                      pl.BlockSpec((tk, tn), lambda i, j, k: (k, j)),
                      pl.BlockSpec((1, tn), lambda i, j, k: (0, j))],
            out_specs=pl.BlockSpec((tm, tn), lambda i, j, k: (i, j)),
            scratch_shapes=[pltpu.VMEM((tm, tn), jnp.float32)]),
        compiler_params=pltpu.CompilerParams(
            dimension_semantics=("parallel", "parallel", "arbitrary"),
            vmem_limit_bytes=_vmem_limit_bytes()),
    )(x_p, w_p, b_p)
    if Mp != M or Np != N:
        out = out[:M, :N]
    return out


# ----------------------------------------------------------------------------
# Fused LSTM layer kernel: input projection + recurrence in one kernel.
# Grid = (batch-halves [parallel], time-chunks [arbitrary]); an in-kernel
# bounded-unroll fori_loop walks the time steps of each chunk, carrying (h, c)
# in f32 VMEM scratch.  Gate layout follows PyTorch: [i | f | g | o].
# ----------------------------------------------------------------------------
def _lstm_layer_kernel(x_ref, wih_ref, whh_ref, bias_ref, h0_ref, c0_ref,
                       y_ref, hN_ref, cN_ref, h_sc, c_sc):
    chunk = pl.program_id(1)

    @pl.when(chunk == 0)
    def _():
        h_sc[...] = h0_ref[...]
        c_sc[...] = c0_ref[...]

    t_chunk = x_ref.shape[0]
    H = h_sc.shape[-1]
    bias = bias_ref[...]                         # (1, 4H) f32, hoisted

    def step(t, carry):
        h, c = carry                             # f32 (Bb, H)
        # Fused input projection for this step (independent of h, overlaps
        # with the serial recurrent chain) + recurrent matmul; f32 accumulate.
        gates = (jnp.dot(x_ref[t], wih_ref[...],
                         preferred_element_type=jnp.float32)
                 + jnp.dot(h.astype(whh_ref.dtype), whh_ref[...],
                           preferred_element_type=jnp.float32)
                 + bias)
        # NOTE: for production H (multiple of 128) these slices are lane-aligned.
        i_g = jax.nn.sigmoid(gates[:, 0 * H:1 * H])
        f_g = jax.nn.sigmoid(gates[:, 1 * H:2 * H])
        g_g = jnp.tanh(gates[:, 2 * H:3 * H])
        o_g = jax.nn.sigmoid(gates[:, 3 * H:4 * H])
        c_new = f_g * c + i_g * g_g
        h_new = o_g * jnp.tanh(c_new)
        y_ref[t] = h_new.astype(y_ref.dtype)
        return h_new, c_new

    if t_chunk % 8 == 0:
        unroll = 8                               # bounded unroll only
    elif t_chunk % 4 == 0:
        unroll = 4
    else:
        unroll = 1
    h_fin, c_fin = lax.fori_loop(0, t_chunk, step,
                                 (h_sc[...], c_sc[...]), unroll=unroll)
    h_sc[...] = h_fin
    c_sc[...] = c_fin

    @pl.when(chunk == pl.num_programs(1) - 1)
    def _():
        hN_ref[...] = h_fin
        cN_ref[...] = c_fin


def lstm_layer_pallas(x_tbe, wih, whh, bias, h0, c0, *, y_dtype):
    """x_tbe: (T, B, E) compute dtype; wih: (E, 4H); whh: (H, 4H);
    bias: (1, 4H) f32; h0/c0: (B, H) f32.
    Returns y (T, B, H) y_dtype, h_N (B, H) f32, c_N (B, H) f32."""
    T, B, E = x_tbe.shape
    H = h0.shape[-1]
    G = 4 * H
    cb = jnp.dtype(x_tbe.dtype).itemsize
    yb = jnp.dtype(y_dtype).itemsize

    # Split batch across TensorCores (v7x) only when halves stay sublane-aligned.
    nb = 2 if (B % 16 == 0) else 1
    Bb = B // nb
    t_chunk = _choose_t_chunk(T, Bb, E, H, cb, yb)
    grid = (nb, T // t_chunk)

    # TODO(synk): grid-invariant weight blocks (wih/whh/bias/h0/c0) could be
    # single-buffered via pipeline_mode=pl.Buffered(1) to save a redundant
    # VMEM copy; kept at the default double-buffering for robustness.
    return pl.pallas_call(
        _lstm_layer_kernel,
        out_shape=(jax.ShapeDtypeStruct((T, B, H), y_dtype),
                   jax.ShapeDtypeStruct((B, H), jnp.float32),
                   jax.ShapeDtypeStruct((B, H), jnp.float32)),
        grid_spec=pltpu.PrefetchScalarGridSpec(
            num_scalar_prefetch=0,
            grid=grid,
            in_specs=[
                pl.BlockSpec((t_chunk, Bb, E), lambda b, c: (c, b, 0)),
                pl.BlockSpec((E, G), lambda b, c: (0, 0)),
                pl.BlockSpec((H, G), lambda b, c: (0, 0)),
                pl.BlockSpec((1, G), lambda b, c: (0, 0)),
                pl.BlockSpec((Bb, H), lambda b, c: (b, 0)),
                pl.BlockSpec((Bb, H), lambda b, c: (b, 0)),
            ],
            out_specs=(
                pl.BlockSpec((t_chunk, Bb, H), lambda b, c: (c, b, 0)),
                pl.BlockSpec((Bb, H), lambda b, c: (b, 0)),
                pl.BlockSpec((Bb, H), lambda b, c: (b, 0)),
            ),
            scratch_shapes=[pltpu.VMEM((Bb, H), jnp.float32),
                            pltpu.VMEM((Bb, H), jnp.float32)]),
        compiler_params=pltpu.CompilerParams(
            dimension_semantics=("parallel", "arbitrary"),
            vmem_limit_bytes=_vmem_limit_bytes()),
    )(x_tbe, wih, whh, bias, h0, c0)


# ----------------------------------------------------------------------------
# Full model forward (time-major activations between layers).
# ----------------------------------------------------------------------------
def lstm_language_model_forward(params, x_tokens, hidden,
                                compute_dtype=jnp.bfloat16):
    """x_tokens: (B, T) int32; hidden: (h0, c0) each (num_layers, B, H).
    Returns logits (B, T, V) f32 and (h_N, c_N)."""
    h0_all, c0_all = hidden
    num_layers = h0_all.shape[0]
    B, T = x_tokens.shape

    # Embedding gather straight into time-major (T, B, E); only the tiny int32
    # token matrix is transposed.
    # TODO(synk): embedding gather stays in XLA (jnp.take); dropout layers are
    # identity (eval-mode semantics).
    x_tbe = jnp.take(params["embedding"], x_tokens.T, axis=0).astype(compute_dtype)

    h_finals, c_finals = [], []
    for l in range(num_layers):
        wih = params[f"wih_{l}"].astype(compute_dtype)   # (E_in, 4H)
        whh = params[f"whh_{l}"].astype(compute_dtype)   # (H, 4H)
        bias = params[f"bias_{l}"]                       # (1, 4H) f32
        y, h_n, c_n = lstm_layer_pallas(x_tbe, wih, whh, bias,
                                        h0_all[l], c0_all[l],
                                        y_dtype=compute_dtype)
        h_finals.append(h_n)
        c_finals.append(c_n)
        x_tbe = y                                        # inter-layer dropout = identity

    # Transpose only the (T, B, H) hidden slab (V/H times smaller than logits),
    # then the head writes (B*T, V) which reshapes for free into (B, T, V).
    H = x_tbe.shape[-1]
    out_bth = jnp.swapaxes(x_tbe, 0, 1).reshape(B * T, H)
    logits = matmul_bias_pallas(out_bth,
                                params["fc_w"].astype(compute_dtype),
                                params["fc_b"],
                                out_dtype=jnp.float32)   # (B*T, V)
    V = logits.shape[-1]
    logits = logits.reshape(B, T, V)

    return logits, (jnp.stack(h_finals, axis=0), jnp.stack(c_finals, axis=0))


# ----------------------------------------------------------------------------
# Pure-JAX reference (f32) for correctness checks.
# ----------------------------------------------------------------------------
def reference_forward(params, x_tokens, hidden):
    h0_all, c0_all = hidden
    num_layers = h0_all.shape[0]
    embed = jnp.take(params["embedding"], x_tokens, axis=0)      # (B, T, E)
    layer_in = jnp.transpose(embed, (1, 0, 2))                   # (T, B, E)
    T = layer_in.shape[0]
    h_fin, c_fin = [], []
    for l in range(num_layers):
        wih_t, whh_t, bias = (params[f"wih_{l}"], params[f"whh_{l}"],
                              params[f"bias_{l}"])
        H = whh_t.shape[0]
        h, c = h0_all[l], c0_all[l]
        ys = []
        for t in range(T):
            gates = layer_in[t] @ wih_t + h @ whh_t + bias
            i = jax.nn.sigmoid(gates[:, 0 * H:1 * H])
            f = jax.nn.sigmoid(gates[:, 1 * H:2 * H])
            g = jnp.tanh(gates[:, 2 * H:3 * H])
            o = jax.nn.sigmoid(gates[:, 3 * H:4 * H])
            c = f * c + i * g
            h = o * jnp.tanh(c)
            ys.append(h)
        layer_in = jnp.stack(ys, axis=0)
        h_fin.append(h)
        c_fin.append(c)
    out = jnp.transpose(layer_in, (1, 0, 2))
    logits = out @ params["fc_w"] + params["fc_b"][0]
    return logits, (jnp.stack(h_fin), jnp.stack(c_fin))


# ----------------------------------------------------------------------------
# Deterministic parameter construction (nn.Embedding / nn.LSTM / nn.Linear).
# ----------------------------------------------------------------------------
def make_params(key, vocab_size, embed_dim, hidden_dim, num_layers):
    params = {}
    k = jax.random.split(key, 3 + 4 * num_layers)
    ki = iter(k)
    params["embedding"] = jax.random.normal(next(ki), (vocab_size, embed_dim),
                                            jnp.float32)
    bound = 1.0 / jnp.sqrt(hidden_dim)
    for l in range(num_layers):
        in_dim = embed_dim if l == 0 else hidden_dim
        w_ih = jax.random.uniform(next(ki), (4 * hidden_dim, in_dim),
                                  jnp.float32, -bound, bound)
        w_hh = jax.random.uniform(next(ki), (4 * hidden_dim, hidden_dim),
                                  jnp.float32, -bound, bound)
        b_ih = jax.random.uniform(next(ki), (4 * hidden_dim,),
                                  jnp.float32, -bound, bound)
        b_hh = jax.random.uniform(next(ki), (4 * hidden_dim,),
                                  jnp.float32, -bound, bound)
        params[f"wih_{l}"] = w_ih.T                      # (in, 4H)
        params[f"whh_{l}"] = w_hh.T                      # (H, 4H)
        params[f"bias_{l}"] = (b_ih + b_hh)[None, :]     # (1, 4H)
    fc_bound = 1.0 / jnp.sqrt(hidden_dim)
    fc_w = jax.random.uniform(next(ki), (vocab_size, hidden_dim),
                              jnp.float32, -fc_bound, fc_bound)
    fc_b = jax.random.uniform(next(ki), (vocab_size,),
                              jnp.float32, -fc_bound, fc_bound)
    params["fc_w"] = fc_w.T                              # (H, V)
    params["fc_b"] = fc_b[None, :]                       # (1, V)
    return params


if __name__ == "__main__":
    vocab_size, embed_dim, hidden_dim, num_layers = 128, 32, 32, 2
    batch, seq = 2, 8

    key = jax.random.PRNGKey(0)
    k_param, k_tok = jax.random.split(key)
    params = make_params(k_param, vocab_size, embed_dim, hidden_dim, num_layers)

    x = jax.random.randint(k_tok, (batch, seq), 0, vocab_size, jnp.int32)
    hidden = (jnp.zeros((num_layers, batch, hidden_dim), jnp.float32),
              jnp.zeros((num_layers, batch, hidden_dim), jnp.float32))

    fwd_f32 = jax.jit(functools.partial(lstm_language_model_forward,
                                        compute_dtype=jnp.float32))
    fwd_bf16 = jax.jit(functools.partial(lstm_language_model_forward,
                                         compute_dtype=jnp.bfloat16))

    ref_logits, (ref_h, ref_c) = reference_forward(params, x, hidden)

    # f32 path: tight check against the pure-JAX reference.
    logits, (h_n, c_n) = fwd_f32(params, x, hidden)
    jax.block_until_ready((logits, h_n, c_n))
    assert logits.shape == (batch, seq, vocab_size)
    assert h_n.shape == (num_layers, batch, hidden_dim)
    assert c_n.shape == (num_layers, batch, hidden_dim)
    assert jnp.allclose(logits, ref_logits, atol=2e-4, rtol=2e-4)
    assert jnp.allclose(h_n, ref_h, atol=1e-4, rtol=1e-4)
    assert jnp.allclose(c_n, ref_c, atol=1e-4, rtol=1e-4)

    # bf16 MXU path (f32 accumulate + f32 cell/hidden state): looser tolerance.
    logits_b, (h_b, c_b) = fwd_bf16(params, x, hidden)
    jax.block_until_ready((logits_b, h_b, c_b))
    assert jnp.allclose(logits_b, ref_logits, atol=1e-1, rtol=5e-2)
    assert jnp.allclose(h_b, ref_h, atol=5e-2, rtol=5e-2)
    assert jnp.allclose(c_b, ref_c, atol=5e-2, rtol=5e-2)

    print("KERNEL_OK")
</pallas_src>

<mosaic_0001>
module attributes {stable_mosaic.version = 11 : i64} {
  func.func @_lstm_layer_kernel(%arg0: i32, %arg1: i32, %arg2: memref<8x2x32xf32, #tpu.memory_space<vmem>>, %arg3: memref<32x128xf32, #tpu.memory_space<vmem>>, %arg4: memref<32x128xf32, #tpu.memory_space<vmem>>, %arg5: memref<1x128xf32, #tpu.memory_space<vmem>>, %arg6: memref<2x32xf32, #tpu.memory_space<vmem>>, %arg7: memref<2x32xf32, #tpu.memory_space<vmem>>, %arg8: memref<8x2x32xf32, #tpu.memory_space<vmem>>, %arg9: memref<2x32xf32, #tpu.memory_space<vmem>>, %arg10: memref<2x32xf32, #tpu.memory_space<vmem>>, %arg11: memref<2x32xf32, #tpu.memory_space<vmem>>, %arg12: memref<2x32xf32, #tpu.memory_space<vmem>>) attributes {dimension_semantics = [#tpu.dimension_semantics<parallel>, #tpu.dimension_semantics<arbitrary>], iteration_bounds = array<i64: 1, 1>, scalar_prefetch = 0 : i64, scratch_operands = 2 : i64, tpu.core_type = #tpu.core_type<tc>, window_params = [{transform_indices = @transform_0, window_bounds = array<i64: 8, 2, 32>}, {pipeline_mode = #tpu.pipeline_mode<synchronous>, transform_indices = @transform_1, window_bounds = array<i64: 32, 128>}, {pipeline_mode = #tpu.pipeline_mode<synchronous>, transform_indices = @transform_2, window_bounds = array<i64: 32, 128>}, {pipeline_mode = #tpu.pipeline_mode<synchronous>, transform_indices = @transform_3, window_bounds = array<i64: 1, 128>}, {transform_indices = @transform_4, window_bounds = array<i64: 2, 32>}, {transform_indices = @transform_5, window_bounds = array<i64: 2, 32>}, {transform_indices = @transform_6, window_bounds = array<i64: 8, 2, 32>}, {transform_indices = @transform_7, window_bounds = array<i64: 2, 32>}, {transform_indices = @transform_8, window_bounds = array<i64: 2, 32>}]} {
    %c0_i32 = arith.constant 0 : i32
    %0 = arith.cmpi eq, %arg1, %c0_i32 : i32
    %1 = arith.extui %0 : i1 to i32
    %c0_i32_0 = arith.constant 0 : i32
    %2 = arith.cmpi ne, %1, %c0_i32_0 : i32
    scf.if %2 {
      %c0_116 = arith.constant 0 : index
      %c0_117 = arith.constant 0 : index
      %323 = vector.load %arg6[%c0_116, %c0_117] : memref<2x32xf32, #tpu.memory_space<vmem>>, vector<2x32xf32>
      %c0_118 = arith.constant 0 : index
      %c0_119 = arith.constant 0 : index
      %324 = vector.load %arg11[%c0_118, %c0_119] : memref<2x32xf32, #tpu.memory_space<vmem>>, vector<2x32xf32>
      tpu.vector_store %arg11[%c0_118, %c0_119], %323 {strides = array<i32>} : memref<2x32xf32, #tpu.memory_space<vmem>>, vector<2x32xf32>,
      %c0_120 = arith.constant 0 : index
      %c0_121 = arith.constant 0 : index
      %325 = vector.load %arg7[%c0_120, %c0_121] : memref<2x32xf32, #tpu.memory_space<vmem>>, vector<2x32xf32>
      %c0_122 = arith.constant 0 : index
      %c0_123 = arith.constant 0 : index
      %326 = vector.load %arg12[%c0_122, %c0_123] : memref<2x32xf32, #tpu.memory_space<vmem>>, vector<2x32xf32>
      tpu.vector_store %arg12[%c0_122, %c0_123], %325 {strides = array<i32>} : memref<2x32xf32, #tpu.memory_space<vmem>>, vector<2x32xf32>,
    } else {
    }
    %c0 = arith.constant 0 : index
    %c0_1 = arith.constant 0 : index
    %3 = vector.load %arg5[%c0, %c0_1] : memref<1x128xf32, #tpu.memory_space<vmem>>, vector<1x128xf32>
    %c0_2 = arith.constant 0 : index
    %c0_3 = arith.constant 0 : index
    %4 = vector.load %arg11[%c0_2, %c0_3] : memref<2x32xf32, #tpu.memory_space<vmem>>, vector<2x32xf32>
    %c0_4 = arith.constant 0 : index
    %c0_5 = arith.constant 0 : index
    %5 = vector.load %arg12[%c0_4, %c0_5] : memref<2x32xf32, #tpu.memory_space<vmem>>, vector<2x32xf32>
    %c0_i32_6 = arith.constant 0 : i32
    %6 = arith.index_cast %c0_i32_6 : i32 to index
    %c0_7 = arith.constant 0 : index
    %c0_8 = arith.constant 0 : index
    %7 = vector.load %arg2[%6, %c0_7, %c0_8] : memref<8x2x32xf32, #tpu.memory_space<vmem>>, vector<1x2x32xf32>
    %8 = vector.shape_cast %7 : vector<1x2x32xf32> to vector<2x32xf32>
    %c0_9 = arith.constant 0 : index
    %c0_10 = arith.constant 0 : index
    %9 = vector.load %arg3[%c0_9, %c0_10] : memref<32x128xf32, #tpu.memory_space<vmem>>, vector<32x128xf32>
    %cst = arith.constant dense<0.000000e+00> : vector<2x128xf32>
    %10 = tpu.matmul %8, %9, %cst {dimension_numbers = #tpu.dot_dimension_numbers<[1], [0], [0], [1], [0, 0, 1, 1], [], []>} : vector<2x32xf32>, vector<32x128xf32>, vector<2x128xf32> -> vector<2x128xf32>
    %c0_11 = arith.constant 0 : index
    %c0_12 = arith.constant 0 : index
    %11 = vector.load %arg4[%c0_11, %c0_12] : memref<32x128xf32, #tpu.memory_space<vmem>>, vector<32x128xf32>
    %cst_13 = arith.constant dense<0.000000e+00> : vector<2x128xf32>
    %12 = tpu.matmul %4, %11, %cst_13 {dimension_numbers = #tpu.dot_dimension_numbers<[1], [0], [0], [1], [0, 0, 1, 1], [], []>} : vector<2x32xf32>, vector<32x128xf32>, vector<2x128xf32> -> vector<2x128xf32>
    %13 = arith.addf %10, %12 : vector<2x128xf32>
    %14 = vector.broadcast %3 : vector<1x128xf32> to vector<2x128xf32>
    %15 = arith.addf %13, %14 : vector<2x128xf32>
    %16 = vector.extract_strided_slice %15 {offsets = [0, 0], sizes = [2, 32], strides = [1, 1]} : vector<2x128xf32> to vector<2x32xf32>
    %17 = arith.negf %16 : vector<2x32xf32>
    %18 = math.exp %17 : vector<2x32xf32>
    %cst_14 = arith.constant 1.000000e+00 : f32
    %19 = vector.broadcast %cst_14 : f32 to vector<2x32xf32>
    %20 = arith.addf %19, %18 : vector<2x32xf32>
    %21 = arith.divf %19, %20 : vector<2x32xf32>
    %22 = vector.extract_strided_slice %15 {offsets = [0, 32], sizes = [2, 32], strides = [1, 1]} : vector<2x128xf32> to vector<2x32xf32>
    %23 = arith.negf %22 : vector<2x32xf32>
    %24 = math.exp %23 : vector<2x32xf32>
    %cst_15 = arith.constant 1.000000e+00 : f32
    %25 = vector.broadcast %cst_15 : f32 to vector<2x32xf32>
    %26 = arith.addf %25, %24 : vector<2x32xf32>
    %27 = arith.divf %25, %26 : vector<2x32xf32>
    %28 = vector.extract_strided_slice %15 {offsets = [0, 64], sizes = [2, 32], strides = [1, 1]} : vector<2x128xf32> to vector<2x32xf32>
    %29 = math.tanh %28 : vector<2x32xf32>
    %30 = vector.extract_strided_slice %15 {offsets = [0, 96], sizes = [2, 32], strides = [1, 1]} : vector<2x128xf32> to vector<2x32xf32>
    %31 = arith.negf %30 : vector<2x32xf32>
    %32 = math.exp %31 : vector<2x32xf32>
    %cst_16 = arith.constant 1.000000e+00 : f32
    %33 = vector.broadcast %cst_16 : f32 to vector<2x32xf32>
    %34 = arith.addf %33, %32 : vector<2x32xf32>
    %35 = arith.divf %33, %34 : vector<2x32xf32>
    %36 = arith.mulf %27, %5 : vector<2x32xf32>
    %37 = arith.mulf %21, %29 : vector<2x32xf32>
    %38 = arith.addf %36, %37 : vector<2x32xf32>
    %39 = math.tanh %38 : vector<2x32xf32>
    %40 = arith.mulf %35, %39 : vector<2x32xf32>
    %41 = arith.index_cast %c0_i32_6 : i32 to index
    %c0_17 = arith.constant 0 : index
    %c0_18 = arith.constant 0 : index
    %42 = vector.load %arg8[%41, %c0_17, %c0_18] : memref<8x2x32xf32, #tpu.memory_space<vmem>>, vector<1x2x32xf32>
    %43 = vector.shape_cast %42 : vector<1x2x32xf32> to vector<2x32xf32>
    %44 = vector.shape_cast %40 : vector<2x32xf32> to vector<1x2x32xf32>
    tpu.vector_store %arg8[%41, %c0_17, %c0_18], %44 {strides = array<i32>} : memref<8x2x32xf32, #tpu.memory_space<vmem>>, vector<1x2x32xf32>,
    %c1_i32 = arith.constant 1 : i32
    %45 = arith.index_cast %c1_i32 : i32 to index
    %c0_19 = arith.constant 0 : index
    %c0_20 = arith.constant 0 : index
    %46 = vector.load %arg2[%45, %c0_19, %c0_20] : memref<8x2x32xf32, #tpu.memory_space<vmem>>, vector<1x2x32xf32>
    %47 = vector.shape_cast %46 : vector<1x2x32xf32> to vector<2x32xf32>
    %c0_21 = arith.constant 0 : index
    %c0_22 = arith.constant 0 : index
    %48 = vector.load %arg3[%c0_21, %c0_22] : memref<32x128xf32, #tpu.memory_space<vmem>>, vector<32x128xf32>
    %cst_23 = arith.constant dense<0.000000e+00> : vector<2x128xf32>
    %49 = tpu.matmul %47, %48, %cst_23 {dimension_numbers = #tpu.dot_dimension_numbers<[1], [0], [0], [1], [0, 0, 1, 1], [], []>} : vector<2x32xf32>, vector<32x128xf32>, vector<2x128xf32> -> vector<2x128xf32>
    %c0_24 = arith.constant 0 : index
    %c0_25 = arith.constant 0 : index
    %50 = vector.load %arg4[%c0_24, %c0_25] : memref<32x128xf32, #tpu.memory_space<vmem>>, vector<32x128xf32>
    %cst_26 = arith.constant dense<0.000000e+00> : vector<2x128xf32>
    %51 = tpu.matmul %40, %50, %cst_26 {dimension_numbers = #tpu.dot_dimension_numbers<[1], [0], [0], [1], [0, 0, 1, 1], [], []>} : vector<2x32xf32>, vector<32x128xf32>, vector<2x128xf32> -> vector<2x128xf32>
    %52 = arith.addf %49, %51 : vector<2x128xf32>
    %53 = vector.broadcast %3 : vector<1x128xf32> to vector<2x128xf32>
    %54 = arith.addf %52, %53 : vector<2x128xf32>
    %55 = vector.extract_strided_slice %54 {offsets = [0, 0], sizes = [2, 32], strides = [1, 1]} : vector<2x128xf32> to vector<2x32xf32>
    %56 = arith.negf %55 : vector<2x32xf32>
    %57 = math.exp %56 : vector<2x32xf32>
    %cst_27 = arith.constant 1.000000e+00 : f32
    %58 = vector.broadcast %cst_27 : f32 to vector<2x32xf32>
    %59 = arith.addf %58, %57 : vector<2x32xf32>
    %60 = arith.divf %58, %59 : vector<2x32xf32>
    %61 = vector.extract_strided_slice %54 {offsets = [0, 32], sizes = [2, 32], strides = [1, 1]} : vector<2x128xf32> to vector<2x32xf32>
    %62 = arith.negf %61 : vector<2x32xf32>
    %63 = math.exp %62 : vector<2x32xf32>
    %cst_28 = arith.constant 1.000000e+00 : f32
    %64 = vector.broadcast %cst_28 : f32 to vector<2x32xf32>
    %65 = arith.addf %64, %63 : vector<2x32xf32>
    %66 = arith.divf %64, %65 : vector<2x32xf32>
    %67 = vector.extract_strided_slice %54 {offsets = [0, 64], sizes = [2, 32], strides = [1, 1]} : vector<2x128xf32> to vector<2x32xf32>
    %68 = math.tanh %67 : vector<2x32xf32>
    %69 = vector.extract_strided_slice %54 {offsets = [0, 96], sizes = [2, 32], strides = [1, 1]} : vector<2x128xf32> to vector<2x32xf32>
    %70 = arith.negf %69 : vector<2x32xf32>
    %71 = math.exp %70 : vector<2x32xf32>
    %cst_29 = arith.constant 1.000000e+00 : f32
    %72 = vector.broadcast %cst_29 : f32 to vector<2x32xf32>
    %73 = arith.addf %72, %71 : vector<2x32xf32>
    %74 = arith.divf %72, %73 : vector<2x32xf32>
    %75 = arith.mulf %66, %38 : vector<2x32xf32>
    %76 = arith.mulf %60, %68 : vector<2x32xf32>
    %77 = arith.addf %75, %76 : vector<2x32xf32>
    %78 = math.tanh %77 : vector<2x32xf32>
    %79 = arith.mulf %74, %78 : vector<2x32xf32>
    %80 = arith.index_cast %c1_i32 : i32 to index
    %c0_30 = arith.constant 0 : index
    %c0_31 = arith.constant 0 : index
    %81 = vector.load %arg8[%80, %c0_30, %c0_31] : memref<8x2x32xf32, #tpu.memory_space<vmem>>, vector<1x2x32xf32>
    %82 = vector.shape_cast %81 : vector<1x2x32xf32> to vector<2x32xf32>
    %83 = vector.shape_cast %79 : vector<2x32xf32> to vector<1x2x32xf32>
    tpu.vector_store %arg8[%80, %c0_30, %c0_31], %83 {strides = array<i32>} : memref<8x2x32xf32, #tpu.memory_space<vmem>>, vector<1x2x32xf32>,
    %c2_i32 = arith.constant 2 : i32
    %84 = arith.index_cast %c2_i32 : i32 to index
    %c0_32 = arith.constant 0 : index
    %c0_33 = arith.constant 0 : index
    %85 = vector.load %arg2[%84, %c0_32, %c0_33] : memref<8x2x32xf32, #tpu.memory_space<vmem>>, vector<1x2x32xf32>
    %86 = vector.shape_cast %85 : vector<1x2x32xf32> to vector<2x32xf32>
    %c0_34 = arith.constant 0 : index
    %c0_35 = arith.constant 0 : index
    %87 = vector.load %arg3[%c0_34, %c0_35] : memref<32x128xf32, #tpu.memory_space<vmem>>, vector<32x128xf32>
    %cst_36 = arith.constant dense<0.000000e+00> : vector<2x128xf32>
    %88 = tpu.matmul %86, %87, %cst_36 {dimension_numbers = #tpu.dot_dimension_numbers<[1], [0], [0], [1], [0, 0, 1, 1], [], []>} : vector<2x32xf32>, vector<32x128xf32>, vector<2x128xf32> -> vector<2x128xf32>
    %c0_37 = arith.constant 0 : index
    %c0_38 = arith.constant 0 : index
    %89 = vector.load %arg4[%c0_37, %c0_38] : memref<32x128xf32, #tpu.memory_space<vmem>>, vector<32x128xf32>
    %cst_39 = arith.constant dense<0.000000e+00> : vector<2x128xf32>
    %90 = tpu.matmul %79, %89, %cst_39 {dimension_numbers = #tpu.dot_dimension_numbers<[1], [0], [0], [1], [0, 0, 1, 1], [], []>} : vector<2x32xf32>, vector<32x128xf32>, vector<2x128xf32> -> vector<2x128xf32>
    %91 = arith.addf %88, %90 : vector<2x128xf32>
    %92 = vector.broadcast %3 : vector<1x128xf32> to vector<2x128xf32>
    %93 = arith.addf %91, %92 : vector<2x128xf32>
    %94 = vector.extract_strided_slice %93 {offsets = [0, 0], sizes = [2, 32], strides = [1, 1]} : vector<2x128xf32> to vector<2x32xf32>
    %95 = arith.negf %94 : vector<2x32xf32>
    %96 = math.exp %95 : vector<2x32xf32>
    %cst_40 = arith.constant 1.000000e+00 : f32
    %97 = vector.broadcast %cst_40 : f32 to vector<2x32xf32>
    %98 = arith.addf %97, %96 : vector<2x32xf32>
    %99 = arith.divf %97, %98 : vector<2x32xf32>
    %100 = vector.extract_strided_slice %93 {offsets = [0, 32], sizes = [2, 32], strides = [1, 1]} : vector<2x128xf32> to vector<2x32xf32>
    %101 = arith.negf %100 : vector<2x32xf32>
    %102 = math.exp %101 : vector<2x32xf32>
    %cst_41 = arith.constant 1.000000e+00 : f32
    %103 = vector.broadcast %cst_41 : f32 to vector<2x32xf32>
    %104 = arith.addf %103, %102 : vector<2x32xf32>
    %105 = arith.divf %103, %104 : vector<2x32xf32>
    %106 = vector.extract_strided_slice %93 {offsets = [0, 64], sizes = [2, 32], strides = [1, 1]} : vector<2x128xf32> to vector<2x32xf32>
    %107 = math.tanh %106 : vector<2x32xf32>
    %108 = vector.extract_strided_slice %93 {offsets = [0, 96], sizes = [2, 32], strides = [1, 1]} : vector<2x128xf32> to vector<2x32xf32>
    %109 = arith.negf %108 : vector<2x32xf32>
    %110 = math.exp %109 : vector<2x32xf32>
    %cst_42 = arith.constant 1.000000e+00 : f32
    %111 = vector.broadcast %cst_42 : f32 to vector<2x32xf32>
    %112 = arith.addf %111, %110 : vector<2x32xf32>
    %113 = arith.divf %111, %112 : vector<2x32xf32>
    %114 = arith.mulf %105, %77 : vector<2x32xf32>
    %115 = arith.mulf %99, %107 : vector<2x32xf32>
    %116 = arith.addf %114, %115 : vector<2x32xf32>
    %117 = math.tanh %116 : vector<2x32xf32>
    %118 = arith.mulf %113, %117 : vector<2x32xf32>
    %119 = arith.index_cast %c2_i32 : i32 to index
    %c0_43 = arith.constant 0 : index
    %c0_44 = arith.constant 0 : index
    %120 = vector.load %arg8[%119, %c0_43, %c0_44] : memref<8x2x32xf32, #tpu.memory_space<vmem>>, vector<1x2x32xf32>
    %121 = vector.shape_cast %120 : vector<1x2x32xf32> to vector<2x32xf32>
    %122 = vector.shape_cast %118 : vector<2x32xf32> to vector<1x2x32xf32>
    tpu.vector_store %arg8[%119, %c0_43, %c0_44], %122 {strides = array<i32>} : memref<8x2x32xf32, #tpu.memory_space<vmem>>, vector<1x2x32xf32>,
    %c3_i32 = arith.constant 3 : i32
    %123 = arith.index_cast %c3_i32 : i32 to index
    %c0_45 = arith.constant 0 : index
    %c0_46 = arith.constant 0 : index
    %124 = vector.load %arg2[%123, %c0_45, %c0_46] : memref<8x2x32xf32, #tpu.memory_space<vmem>>, vector<1x2x32xf32>
    %125 = vector.shape_cast %124 : vector<1x2x32xf32> to vector<2x32xf32>
    %c0_47 = arith.constant 0 : index
    %c0_48 = arith.constant 0 : index
    %126 = vector.load %arg3[%c0_47, %c0_48] : memref<32x128xf32, #tpu.memory_space<vmem>>, vector<32x128xf32>
    %cst_49 = arith.constant dense<0.000000e+00> : vector<2x128xf32>
    %127 = tpu.matmul %125, %126, %cst_49 {dimension_numbers = #tpu.dot_dimension_numbers<[1], [0], [0], [1], [0, 0, 1, 1], [], []>} : vector<2x32xf32>, vector<32x128xf32>, vector<2x128xf32> -> vector<2x128xf32>
    %c0_50 = arith.constant 0 : index
    %c0_51 = arith.constant 0 : index
    %128 = vector.load %arg4[%c0_50, %c0_51] : memref<32x128xf32, #tpu.memory_space<vmem>>, vector<32x128xf32>
    %cst_52 = arith.constant dense<0.000000e+00> : vector<2x128xf32>
    %129 = tpu.matmul %118, %128, %cst_52 {dimension_numbers = #tpu.dot_dimension_numbers<[1], [0], [0], [1], [0, 0, 1, 1], [], []>} : vector<2x32xf32>, vector<32x128xf32>, vector<2x128xf32> -> vector<2x128xf32>
    %130 = arith.addf %127, %129 : vector<2x128xf32>
    %131 = vector.broadcast %3 : vector<1x128xf32> to vector<2x128xf32>
    %132 = arith.addf %130, %131 : vector<2x128xf32>
    %133 = vector.extract_strided_slice %132 {offsets = [0, 0], sizes = [2, 32], strides = [1, 1]} : vector<2x128xf32> to vector<2x32xf32>
    %134 = arith.negf %133 : vector<2x32xf32>
    %135 = math.exp %134 : vector<2x32xf32>
    %cst_53 = arith.constant 1.000000e+00 : f32
    %136 = vector.broadcast %cst_53 : f32 to vector<2x32xf32>
    %137 = arith.addf %136, %135 : vector<2x32xf32>
    %138 = arith.divf %136, %137 : vector<2x32xf32>
    %139 = vector.extract_strided_slice %132 {offsets = [0, 32], sizes = [2, 32], strides = [1, 1]} : vector<2x128xf32> to vector<2x32xf32>
    %140 = arith.negf %139 : vector<2x32xf32>
    %141 = math.exp %140 : vector<2x32xf32>
    %cst_54 = arith.constant 1.000000e+00 : f32
    %142 = vector.broadcast %cst_54 : f32 to vector<2x32xf32>
    %143 = arith.addf %142, %141 : vector<2x32xf32>
    %144 = arith.divf %142, %143 : vector<2x32xf32>
    %145 = vector.extract_strided_slice %132 {offsets = [0, 64], sizes = [2, 32], strides = [1, 1]} : vector<2x128xf32> to vector<2x32xf32>
    %146 = math.tanh %145 : vector<2x32xf32>
    %147 = vector.extract_strided_slice %132 {offsets = [0, 96], sizes = [2, 32], strides = [1, 1]} : vector<2x128xf32> to vector<2x32xf32>
    %148 = arith.negf %147 : vector<2x32xf32>
    %149 = math.exp %148 : vector<2x32xf32>
    %cst_55 = arith.constant 1.000000e+00 : f32
    %150 = vector.broadcast %cst_55 : f32 to vector<2x32xf32>
    %151 = arith.addf %150, %149 : vector<2x32xf32>
    %152 = arith.divf %150, %151 : vector<2x32xf32>
    %153 = arith.mulf %144, %116 : vector<2x32xf32>
    %154 = arith.mulf %138, %146 : vector<2x32xf32>
    %155 = arith.addf %153, %154 : vector<2x32xf32>
    %156 = math.tanh %155 : vector<2x32xf32>
    %157 = arith.mulf %152, %156 : vector<2x32xf32>
    %158 = arith.index_cast %c3_i32 : i32 to index
    %c0_56 = arith.constant 0 : index
    %c0_57 = arith.constant 0 : index
    %159 = vector.load %arg8[%158, %c0_56, %c0_57] : memref<8x2x32xf32, #tpu.memory_space<vmem>>, vector<1x2x32xf32>
    %160 = vector.shape_cast %159 : vector<1x2x32xf32> to vector<2x32xf32>
    %161 = vector.shape_cast %157 : vector<2x32xf32> to vector<1x2x32xf32>
    tpu.vector_store %arg8[%158, %c0_56, %c0_57], %161 {strides = array<i32>} : memref<8x2x32xf32, #tpu.memory_space<vmem>>, vector<1x2x32xf32>,
    %c4_i32 = arith.constant 4 : i32
    %162 = arith.index_cast %c4_i32 : i32 to index
    %c0_58 = arith.constant 0 : index
    %c0_59 = arith.constant 0 : index
    %163 = vector.load %arg2[%162, %c0_58, %c0_59] : memref<8x2x32xf32, #tpu.memory_space<vmem>>, vector<1x2x32xf32>
    %164 = vector.shape_cast %163 : vector<1x2x32xf32> to vector<2x32xf32>
    %c0_60 = arith.constant 0 : index
    %c0_61 = arith.constant 0 : index
    %165 = vector.load %arg3[%c0_60, %c0_61] : memref<32x128xf32, #tpu.memory_space<vmem>>, vector<32x128xf32>
    %cst_62 = arith.constant dense<0.000000e+00> : vector<2x128xf32>
    %166 = tpu.matmul %164, %165, %cst_62 {dimension_numbers = #tpu.dot_dimension_numbers<[1], [0], [0], [1], [0, 0, 1, 1], [], []>} : vector<2x32xf32>, vector<32x128xf32>, vector<2x128xf32> -> vector<2x128xf32>
    %c0_63 = arith.constant 0 : index
    %c0_64 = arith.constant 0 : index
    %167 = vector.load %arg4[%c0_63, %c0_64] : memref<32x128xf32, #tpu.memory_space<vmem>>, vector<32x128xf32>
    %cst_65 = arith.constant dense<0.000000e+00> : vector<2x128xf32>
    %168 = tpu.matmul %157, %167, %cst_65 {dimension_numbers = #tpu.dot_dimension_numbers<[1], [0], [0], [1], [0, 0, 1, 1], [], []>} : vector<2x32xf32>, vector<32x128xf32>, vector<2x128xf32> -> vector<2x128xf32>
    %169 = arith.addf %166, %168 : vector<2x128xf32>
    %170 = vector.broadcast %3 : vector<1x128xf32> to vector<2x128xf32>
    %171 = arith.addf %169, %170 : vector<2x128xf32>
    %172 = vector.extract_strided_slice %171 {offsets = [0, 0], sizes = [2, 32], strides = [1, 1]} : vector<2x128xf32> to vector<2x32xf32>
    %173 = arith.negf %172 : vector<2x32xf32>
    %174 = math.exp %173 : vector<2x32xf32>
    %cst_66 = arith.constant 1.000000e+00 : f32
    %175 = vector.broadcast %cst_66 : f32 to vector<2x32xf32>
    %176 = arith.addf %175, %174 : vector<2x32xf32>
    %177 = arith.divf %175, %176 : vector<2x32xf32>
    %178 = vector.extract_strided_slice %171 {offsets = [0, 32], sizes = [2, 32], strides = [1, 1]} : vector<2x128xf32> to vector<2x32xf32>
    %179 = arith.negf %178 : vector<2x32xf32>
    %180 = math.exp %179 : vector<2x32xf32>
    %cst_67 = arith.constant 1.000000e+00 : f32
    %181 = vector.broadcast %cst_67 : f32 to vector<2x32xf32>
    %182 = arith.addf %181, %180 : vector<2x32xf32>
    %183 = arith.divf %181, %182 : vector<2x32xf32>
    %184 = vector.extract_strided_slice %171 {offsets = [0, 64], sizes = [2, 32], strides = [1, 1]} : vector<2x128xf32> to vector<2x32xf32>
    %185 = math.tanh %184 : vector<2x32xf32>
    %186 = vector.extract_strided_slice %171 {offsets = [0, 96], sizes = [2, 32], strides = [1, 1]} : vector<2x128xf32> to vector<2x32xf32>
    %187 = arith.negf %186 : vector<2x32xf32>
    %188 = math.exp %187 : vector<2x32xf32>
    %cst_68 = arith.constant 1.000000e+00 : f32
    %189 = vector.broadcast %cst_68 : f32 to vector<2x32xf32>
    %190 = arith.addf %189, %188 : vector<2x32xf32>
    %191 = arith.divf %189, %190 : vector<2x32xf32>
    %192 = arith.mulf %183, %155 : vector<2x32xf32>
    %193 = arith.mulf %177, %185 : vector<2x32xf32>
    %194 = arith.addf %192, %193 : vector<2x32xf32>
    %195 = math.tanh %194 : vector<2x32xf32>
    %196 = arith.mulf %191, %195 : vector<2x32xf32>
    %197 = arith.index_cast %c4_i32 : i32 to index
    %c0_69 = arith.constant 0 : index
    %c0_70 = arith.constant 0 : index
    %198 = vector.load %arg8[%197, %c0_69, %c0_70] : memref<8x2x32xf32, #tpu.memory_space<vmem>>, vector<1x2x32xf32>
    %199 = vector.shape_cast %198 : vector<1x2x32xf32> to vector<2x32xf32>
    %200 = vector.shape_cast %196 : vector<2x32xf32> to vector<1x2x32xf32>
    tpu.vector_store %arg8[%197, %c0_69, %c0_70], %200 {strides = array<i32>} : memref<8x2x32xf32, #tpu.memory_space<vmem>>, vector<1x2x32xf32>,
    %c5_i32 = arith.constant 5 : i32
    %201 = arith.index_cast %c5_i32 : i32 to index
    %c0_71 = arith.constant 0 : index
    %c0_72 = arith.constant 0 : index
    %202 = vector.load %arg2[%201, %c0_71, %c0_72] : memref<8x2x32xf32, #tpu.memory_space<vmem>>, vector<1x2x32xf32>
    %203 = vector.shape_cast %202 : vector<1x2x32xf32> to vector<2x32xf32>
    %c0_73 = arith.constant 0 : index
    %c0_74 = arith.constant 0 : index
    %204 = vector.load %arg3[%c0_73, %c0_74] : memref<32x128xf32, #tpu.memory_space<vmem>>, vector<32x128xf32>
    %cst_75 = arith.constant dense<0.000000e+00> : vector<2x128xf32>
    %205 = tpu.matmul %203, %204, %cst_75 {dimension_numbers = #tpu.dot_dimension_numbers<[1], [0], [0], [1], [0, 0, 1, 1], [], []>} : vector<2x32xf32>, vector<32x128xf32>, vector<2x128xf32> -> vector<2x128xf32>
    %c0_76 = arith.constant 0 : index
    %c0_77 = arith.constant 0 : index
    %206 = vector.load %arg4[%c0_76, %c0_77] : memref<32x128xf32, #tpu.memory_space<vmem>>, vector<32x128xf32>
    %cst_78 = arith.constant dense<0.000000e+00> : vector<2x128xf32>
    %207 = tpu.matmul %196, %206, %cst_78 {dimension_numbers = #tpu.dot_dimension_numbers<[1], [0], [0], [1], [0, 0, 1, 1], [], []>} : vector<2x32xf32>, vector<32x128xf32>, vector<2x128xf32> -> vector<2x128xf32>
    %208 = arith.addf %205, %207 : vector<2x128xf32>
    %209 = vector.broadcast %3 : vector<1x128xf32> to vector<2x128xf32>
    %210 = arith.addf %208, %209 : vector<2x128xf32>
    %211 = vector.extract_strided_slice %210 {offsets = [0, 0], sizes = [2, 32], strides = [1, 1]} : vector<2x128xf32> to vector<2x32xf32>
    %212 = arith.negf %211 : vector<2x32xf32>
    %213 = math.exp %212 : vector<2x32xf32>
    %cst_79 = arith.constant 1.000000e+00 : f32
    %214 = vector.broadcast %cst_79 : f32 to vector<2x32xf32>
    %215 = arith.addf %214, %213 : vector<2x32xf32>
    %216 = arith.divf %214, %215 : vector<2x32xf32>
    %217 = vector.extract_strided_slice %210 {offsets = [0, 32], sizes = [2, 32], strides = [1, 1]} : vector<2x128xf32> to vector<2x32xf32>
    %218 = arith.negf %217 : vector<2x32xf32>
    %219 = math.exp %218 : vector<2x32xf32>
    %cst_80 = arith.constant 1.000000e+00 : f32
    %220 = vector.broadcast %cst_80 : f32 to vector<2x32xf32>
    %221 = arith.addf %220, %219 : vector<2x32xf32>
    %222 = arith.divf %220, %221 : vector<2x32xf32>
    %223 = vector.extract_strided_slice %210 {offsets = [0, 64], sizes = [2, 32], strides = [1, 1]} : vector<2x128xf32> to vector<2x32xf32>
    %224 = math.tanh %223 : vector<2x32xf32>
    %225 = vector.extract_strided_slice %210 {offsets = [0, 96], sizes = [2, 32], strides = [1, 1]} : vector<2x128xf32> to vector<2x32xf32>
    %226 = arith.negf %225 : vector<2x32xf32>
    %227 = math.exp %226 : vector<2x32xf32>
    %cst_81 = arith.constant 1.000000e+00 : f32
    %228 = vector.broadcast %cst_81 : f32 to vector<2x32xf32>
    %229 = arith.addf %228, %227 : vector<2x32xf32>
    %230 = arith.divf %228, %229 : vector<2x32xf32>
    %231 = arith.mulf %222, %194 : vector<2x32xf32>
    %232 = arith.mulf %216, %224 : vector<2x32xf32>
    %233 = arith.addf %231, %232 : vector<2x32xf32>
    %234 = math.tanh %233 : vector<2x32xf32>
    %235 = arith.mulf %230, %234 : vector<2x32xf32>
    %236 = arith.index_cast %c5_i32 : i32 to index
    %c0_82 = arith.constant 0 : index
    %c0_83 = arith.constant 0 : index
    %237 = vector.load %arg8[%236, %c0_82, %c0_83] : memref<8x2x32xf32, #tpu.memory_space<vmem>>, vector<1x2x32xf32>
    %238 = vector.shape_cast %237 : vector<1x2x32xf32> to vector<2x32xf32>
    %239 = vector.shape_cast %235 : vector<2x32xf32> to vector<1x2x32xf32>
    tpu.vector_store %arg8[%236, %c0_82, %c0_83], %239 {strides = array<i32>} : memref<8x2x32xf32, #tpu.memory_space<vmem>>, vector<1x2x32xf32>,
    %c6_i32 = arith.constant 6 : i32
    %240 = arith.index_cast %c6_i32 : i32 to index
    %c0_84 = arith.constant 0 : index
    %c0_85 = arith.constant 0 : index
    %241 = vector.load %arg2[%240, %c0_84, %c0_85] : memref<8x2x32xf32, #tpu.memory_space<vmem>>, vector<1x2x32xf32>
    %242 = vector.shape_cast %241 : vector<1x2x32xf32> to vector<2x32xf32>
    %c0_86 = arith.constant 0 : index
    %c0_87 = arith.constant 0 : index
    %243 = vector.load %arg3[%c0_86, %c0_87] : memref<32x128xf32, #tpu.memory_space<vmem>>, vector<32x128xf32>
    %cst_88 = arith.constant dense<0.000000e+00> : vector<2x128xf32>
    %244 = tpu.matmul %242, %243, %cst_88 {dimension_numbers = #tpu.dot_dimension_numbers<[1], [0], [0], [1], [0, 0, 1, 1], [], []>} : vector<2x32xf32>, vector<32x128xf32>, vector<2x128xf32> -> vector<2x128xf32>
    %c0_89 = arith.constant 0 : index
    %c0_90 = arith.constant 0 : index
    %245 = vector.load %arg4[%c0_89, %c0_90] : memref<32x128xf32, #tpu.memory_space<vmem>>, vector<32x128xf32>
    %cst_91 = arith.constant dense<0.000000e+00> : vector<2x128xf32>
    %246 = tpu.matmul %235, %245, %cst_91 {dimension_numbers = #tpu.dot_dimension_numbers<[1], [0], [0], [1], [0, 0, 1, 1], [], []>} : vector<2x32xf32>, vector<32x128xf32>, vector<2x128xf32> -> vector<2x128xf32>
    %247 = arith.addf %244, %246 : vector<2x128xf32>
    %248 = vector.broadcast %3 : vector<1x128xf32> to vector<2x128xf32>
    %249 = arith.addf %247, %248 : vector<2x128xf32>
    %250 = vector.extract_strided_slice %249 {offsets = [0, 0], sizes = [2, 32], strides = [1, 1]} : vector<2x128xf32> to vector<2x32xf32>
    %251 = arith.negf %250 : vector<2x32xf32>
    %252 = math.exp %251 : vector<2x32xf32>
    %cst_92 = arith.constant 1.000000e+00 : f32
    %253 = vector.broadcast %cst_92 : f32 to vector<2x32xf32>
    %254 = arith.addf %253, %252 : vector<2x32xf32>
    %255 = arith.divf %253, %254 : vector<2x32xf32>
    %256 = vector.extract_strided_slice %249 {offsets = [0, 32], sizes = [2, 32], strides = [1, 1]} : vector<2x128xf32> to vector<2x32xf32>
    %257 = arith.negf %256 : vector<2x32xf32>
    %258 = math.exp %257 : vector<2x32xf32>
    %cst_93 = arith.constant 1.000000e+00 : f32
    %259 = vector.broadcast %cst_93 : f32 to vector<2x32xf32>
    %260 = arith.addf %259, %258 : vector<2x32xf32>
    %261 = arith.divf %259, %260 : vector<2x32xf32>
    %262 = vector.extract_strided_slice %249 {offsets = [0, 64], sizes = [2, 32], strides = [1, 1]} : vector<2x128xf32> to vector<2x32xf32>
    %263 = math.tanh %262 : vector<2x32xf32>
    %264 = vector.extract_strided_slice %249 {offsets = [0, 96], sizes = [2, 32], strides = [1, 1]} : vector<2x128xf32> to vector<2x32xf32>
    %265 = arith.negf %264 : vector<2x32xf32>
    %266 = math.exp %265 : vector<2x32xf32>
    %cst_94 = arith.constant 1.000000e+00 : f32
    %267 = vector.broadcast %cst_94 : f32 to vector<2x32xf32>
    %268 = arith.addf %267, %266 : vector<2x32xf32>
    %269 = arith.divf %267, %268 : vector<2x32xf32>
    %270 = arith.mulf %261, %233 : vector<2x32xf32>
    %271 = arith.mulf %255, %263 : vector<2x32xf32>
    %272 = arith.addf %270, %271 : vector<2x32xf32>
    %273 = math.tanh %272 : vector<2x32xf32>
    %274 = arith.mulf %269, %273 : vector<2x32xf32>
    %275 = arith.index_cast %c6_i32 : i32 to index
    %c0_95 = arith.constant 0 : index
    %c0_96 = arith.constant 0 : index
    %276 = vector.load %arg8[%275, %c0_95, %c0_96] : memref<8x2x32xf32, #tpu.memory_space<vmem>>, vector<1x2x32xf32>
    %277 = vector.shape_cast %276 : vector<1x2x32xf32> to vector<2x32xf32>
    %278 = vector.shape_cast %274 : vector<2x32xf32> to vector<1x2x32xf32>
    tpu.vector_store %arg8[%275, %c0_95, %c0_96], %278 {strides = array<i32>} : memref<8x2x32xf32, #tpu.memory_space<vmem>>, vector<1x2x32xf32>,
    %c7_i32 = arith.constant 7 : i32
    %279 = arith.index_cast %c7_i32 : i32 to index
    %c0_97 = arith.constant 0 : index
    %c0_98 = arith.constant 0 : index
    %280 = vector.load %arg2[%279, %c0_97, %c0_98] : memref<8x2x32xf32, #tpu.memory_space<vmem>>, vector<1x2x32xf32>
    %281 = vector.shape_cast %280 : vector<1x2x32xf32> to vector<2x32xf32>
    %c0_99 = arith.constant 0 : index
    %c0_100 = arith.constant 0 : index
    %282 = vector.load %arg3[%c0_99, %c0_100] : memref<32x128xf32, #tpu.memory_space<vmem>>, vector<32x128xf32>
    %cst_101 = arith.constant dense<0.000000e+00> : vector<2x128xf32>
    %283 = tpu.matmul %281, %282, %cst_101 {dimension_numbers = #tpu.dot_dimension_numbers<[1], [0], [0], [1], [0, 0, 1, 1], [], []>} : vector<2x32xf32>, vector<32x128xf32>, vector<2x128xf32> -> vector<2x128xf32>
    %c0_102 = arith.constant 0 : index
    %c0_103 = arith.constant 0 : index
    %284 = vector.load %arg4[%c0_102, %c0_103] : memref<32x128xf32, #tpu.memory_space<vmem>>, vector<32x128xf32>
    %cst_104 = arith.constant dense<0.000000e+00> : vector<2x128xf32>
    %285 = tpu.matmul %274, %284, %cst_104 {dimension_numbers = #tpu.dot_dimension_numbers<[1], [0], [0], [1], [0, 0, 1, 1], [], []>} : vector<2x32xf32>, vector<32x128xf32>, vector<2x128xf32> -> vector<2x128xf32>
    %286 = arith.addf %283, %285 : vector<2x128xf32>
    %287 = vector.broadcast %3 : vector<1x128xf32> to vector<2x128xf32>
    %288 = arith.addf %286, %287 : vector<2x128xf32>
    %289 = vector.extract_strided_slice %288 {offsets = [0, 0], sizes = [2, 32], strides = [1, 1]} : vector<2x128xf32> to vector<2x32xf32>
    %290 = arith.negf %289 : vector<2x32xf32>
    %291 = math.exp %290 : vector<2x32xf32>
    %cst_105 = arith.constant 1.000000e+00 : f32
    %292 = vector.broadcast %cst_105 : f32 to vector<2x32xf32>
    %293 = arith.addf %292, %291 : vector<2x32xf32>
    %294 = arith.divf %292, %293 : vector<2x32xf32>
    %295 = vector.extract_strided_slice %288 {offsets = [0, 32], sizes = [2, 32], strides = [1, 1]} : vector<2x128xf32> to vector<2x32xf32>
    %296 = arith.negf %295 : vector<2x32xf32>
    %297 = math.exp %296 : vector<2x32xf32>
    %cst_106 = arith.constant 1.000000e+00 : f32
    %298 = vector.broadcast %cst_106 : f32 to vector<2x32xf32>
    %299 = arith.addf %298, %297 : vector<2x32xf32>
    %300 = arith.divf %298, %299 : vector<2x32xf32>
    %301 = vector.extract_strided_slice %288 {offsets = [0, 64], sizes = [2, 32], strides = [1, 1]} : vector<2x128xf32> to vector<2x32xf32>
    %302 = math.tanh %301 : vector<2x32xf32>
    %303 = vector.extract_strided_slice %288 {offsets = [0, 96], sizes = [2, 32], strides = [1, 1]} : vector<2x128xf32> to vector<2x32xf32>
    %304 = arith.negf %303 : vector<2x32xf32>
    %305 = math.exp %304 : vector<2x32xf32>
    %cst_107 = arith.constant 1.000000e+00 : f32
    %306 = vector.broadcast %cst_107 : f32 to vector<2x32xf32>
    %307 = arith.addf %306, %305 : vector<2x32xf32>
    %308 = arith.divf %306, %307 : vector<2x32xf32>
    %309 = arith.mulf %300, %272 : vector<2x32xf32>
    %310 = arith.mulf %294, %302 : vector<2x32xf32>
    %311 = arith.addf %309, %310 : vector<2x32xf32>
    %312 = math.tanh %311 : vector<2x32xf32>
    %313 = arith.mulf %308, %312 : vector<2x32xf32>
    %314 = arith.index_cast %c7_i32 : i32 to index
    %c0_108 = arith.constant 0 : index
    %c0_109 = arith.constant 0 : index
    %315 = vector.load %arg8[%314, %c0_108, %c0_109] : memref<8x2x32xf32, #tpu.memory_space<vmem>>, vector<1x2x32xf32>
    %316 = vector.shape_cast %315 : vector<1x2x32xf32> to vector<2x32xf32>
    %317 = vector.shape_cast %313 : vector<2x32xf32> to vector<1x2x32xf32>
    tpu.vector_store %arg8[%314, %c0_108, %c0_109], %317 {strides = array<i32>} : memref<8x2x32xf32, #tpu.memory_space<vmem>>, vector<1x2x32xf32>,
    %c8_i32 = arith.constant 8 : i32
    %c0_110 = arith.constant 0 : index
    %c0_111 = arith.constant 0 : index
    %318 = vector.load %arg11[%c0_110, %c0_111] : memref<2x32xf32, #tpu.memory_space<vmem>>, vector<2x32xf32>
    tpu.vector_store %arg11[%c0_110, %c0_111], %313 {strides = array<i32>} : memref<2x32xf32, #tpu.memory_space<vmem>>, vector<2x32xf32>,
    %c0_112 = arith.constant 0 : index
    %c0_113 = arith.constant 0 : index
    %319 = vector.load %arg12[%c0_112, %c0_113] : memref<2x32xf32, #tpu.memory_space<vmem>>, vector<2x32xf32>
    tpu.vector_store %arg12[%c0_112, %c0_113], %311 {strides = array<i32>} : memref<2x32xf32, #tpu.memory_space<vmem>>, vector<2x32xf32>,
    %c0_i32_114 = arith.constant 0 : i32
    %320 = arith.cmpi eq, %arg1, %c0_i32_114 : i32
    %321 = arith.extui %320 : i1 to i32
    %c0_i32_115 = arith.constant 0 : i32
    %322 = arith.cmpi ne, %321, %c0_i32_115 : i32
    scf.if %322 {
      %c0_116 = arith.constant 0 : index
      %c0_117 = arith.constant 0 : index
      %323 = vector.load %arg9[%c0_116, %c0_117] : memref<2x32xf32, #tpu.memory_space<vmem>>, vector<2x32xf32>
      tpu.vector_store %arg9[%c0_116, %c0_117], %313 {strides = array<i32>} : memref<2x32xf32, #tpu.memory_space<vmem>>, vector<2x32xf32>,
      %c0_118 = arith.constant 0 : index
      %c0_119 = arith.constant 0 : index
      %324 = vector.load %arg10[%c0_118, %c0_119] : memref<2x32xf32, #tpu.memory_space<vmem>>, vector<2x32xf32>
      tpu.vector_store %arg10[%c0_118, %c0_119], %311 {strides = array<i32>} : memref<2x32xf32, #tpu.memory_space<vmem>>, vector<2x32xf32>,
    } else {
    }
    return
  }
  func.func @transform_0(%arg0: i32, %arg1: i32) -> (i32, i32, i32) {
    %c0_i32 = arith.constant 0 : i32
    %c0_i32_0 = arith.constant 0 : i32
    return %arg1, %arg0, %c0_i32 : i32, i32, i32
  }
  func.func @transform_1(%arg0: i32, %arg1: i32) -> (i32, i32) {
    %c0_i32 = arith.constant 0 : i32
    %c0_i32_0 = arith.constant 0 : i32
    %c0_i32_1 = arith.constant 0 : i32
    return %c0_i32, %c0_i32_0 : i32, i32
  }
  func.func @transform_2(%arg0: i32, %arg1: i32) -> (i32, i32) {
    %c0_i32 = arith.constant 0 : i32
    %c0_i32_0 = arith.constant 0 : i32
    %c0_i32_1 = arith.constant 0 : i32
    return %c0_i32, %c0_i32_0 : i32, i32
  }
  func.func @transform_3(%arg0: i32, %arg1: i32) -> (i32, i32) {
    %c0_i32 = arith.constant 0 : i32
    %c0_i32_0 = arith.constant 0 : i32
    %c0_i32_1 = arith.constant 0 : i32
    return %c0_i32, %c0_i32_0 : i32, i32
  }
  func.func @transform_4(%arg0: i32, %arg1: i32) -> (i32, i32) {
    %c0_i32 = arith.constant 0 : i32
    %c0_i32_0 = arith.constant 0 : i32
    return %arg0, %c0_i32 : i32, i32
  }
  func.func @transform_5(%arg0: i32, %arg1: i32) -> (i32, i32) {
    %c0_i32 = arith.constant 0 : i32
    %c0_i32_0 = arith.constant 0 : i32
    return %arg0, %c0_i32 : i32, i32
  }
  func.func @transform_6(%arg0: i32, %arg1: i32) -> (i32, i32, i32) {
    %c0_i32 = arith.constant 0 : i32
    %c0_i32_0 = arith.constant 0 : i32
    return %arg1, %arg0, %c0_i32 : i32, i32, i32
  }
  func.func @transform_7(%arg0: i32, %arg1: i32) -> (i32, i32) {
    %c0_i32 = arith.constant 0 : i32
    %c0_i32_0 = arith.constant 0 : i32
    return %arg0, %c0_i32 : i32, i32
  }
  func.func @transform_8(%arg0: i32, %arg1: i32) -> (i32, i32) {
    %c0_i32 = arith.constant 0 : i32
    %c0_i32_0 = arith.constant 0 : i32
    return %arg0, %c0_i32 : i32, i32
  }
}

module attributes {stable_mosaic.version = 11 : i64} {
  func.func @_matmul_bias_kernel(%arg0: i32, %arg1: i32, %arg2: i32, %arg3: memref<16x128xf32, #tpu.memory_space<vmem>>, %arg4: memref<128x128xf32, #tpu.memory_space<vmem>>, %arg5: memref<1x128xf32, #tpu.memory_space<vmem>>, %arg6: memref<16x128xf32, #tpu.memory_space<vmem>>, %arg7: memref<16x128xf32, #tpu.memory_space<vmem>>) attributes {dimension_semantics = [#tpu.dimension_semantics<parallel>, #tpu.dimension_semantics<parallel>, #tpu.dimension_semantics<arbitrary>], iteration_bounds = array<i64: 1, 1, 1>, scalar_prefetch = 0 : i64, scratch_operands = 1 : i64, tpu.core_type = #tpu.core_type<tc>, window_params = [{transform_indices = @transform_0, window_bounds = array<i64: 16, 128>}, {transform_indices = @transform_1, window_bounds = array<i64: 128, 128>}, {transform_indices = @transform_2, window_bounds = array<i64: 1, 128>}, {transform_indices = @transform_3, window_bounds = array<i64: 16, 128>}]} {
    %c0_i32 = arith.constant 0 : i32
    %0 = arith.cmpi eq, %arg2, %c0_i32 : i32
    %1 = arith.extui %0 : i1 to i32
    %c0_i32_0 = arith.constant 0 : i32
    %2 = arith.cmpi ne, %1, %c0_i32_0 : i32
    scf.if %2 {
      %cst_10 = arith.constant 0.000000e+00 : f32
      %12 = vector.broadcast %cst_10 : f32 to vector<16x128xf32>
      %c0_11 = arith.constant 0 : index
      %c0_12 = arith.constant 0 : index
      %13 = vector.load %arg7[%c0_11, %c0_12] : memref<16x128xf32, #tpu.memory_space<vmem>>, vector<16x128xf32>
      tpu.vector_store %arg7[%c0_11, %c0_12], %12 {strides = array<i32>} : memref<16x128xf32, #tpu.memory_space<vmem>>, vector<16x128xf32>,
    } else {
    }
    %c0 = arith.constant 0 : index
    %c0_1 = arith.constant 0 : index
    %3 = vector.load %arg7[%c0, %c0_1] : memref<16x128xf32, #tpu.memory_space<vmem>>, vector<16x128xf32>
    %c0_2 = arith.constant 0 : index
    %c0_3 = arith.constant 0 : index
    %4 = vector.load %arg3[%c0_2, %c0_3] : memref<16x128xf32, #tpu.memory_space<vmem>>, vector<16x128xf32>
    %c0_4 = arith.constant 0 : index
    %c0_5 = arith.constant 0 : index
    %5 = vector.load %arg4[%c0_4, %c0_5] : memref<128x128xf32, #tpu.memory_space<vmem>>, vector<128x128xf32>
    %cst = arith.constant dense<0.000000e+00> : vector<16x128xf32>
    %6 = tpu.matmul %4, %5, %cst {dimension_numbers = #tpu.dot_dimension_numbers<[1], [0], [0], [1], [0, 0, 1, 1], [], []>} : vector<16x128xf32>, vector<128x128xf32>, vector<16x128xf32> -> vector<16x128xf32>
    %7 = arith.addf %3, %6 : vector<16x128xf32>
    %c0_6 = arith.constant 0 : index
    %c0_7 = arith.constant 0 : index
    %8 = vector.load %arg7[%c0_6, %c0_7] : memref<16x128xf32, #tpu.memory_space<vmem>>, vector<16x128xf32>
    tpu.vector_store %arg7[%c0_6, %c0_7], %7 {strides = array<i32>} : memref<16x128xf32, #tpu.memory_space<vmem>>, vector<16x128xf32>,
    %c0_i32_8 = arith.constant 0 : i32
    %9 = arith.cmpi eq, %arg2, %c0_i32_8 : i32
    %10 = arith.extui %9 : i1 to i32
    %c0_i32_9 = arith.constant 0 : i32
    %11 = arith.cmpi ne, %10, %c0_i32_9 : i32
    scf.if %11 {
      %c0_10 = arith.constant 0 : index
      %c0_11 = arith.constant 0 : index
      %12 = vector.load %arg7[%c0_10, %c0_11] : memref<16x128xf32, #tpu.memory_space<vmem>>, vector<16x128xf32>
      %c0_12 = arith.constant 0 : index
      %c0_13 = arith.constant 0 : index
      %13 = vector.load %arg5[%c0_12, %c0_13] : memref<1x128xf32, #tpu.memory_space<vmem>>, vector<1x128xf32>
      %14 = vector.broadcast %13 : vector<1x128xf32> to vector<16x128xf32>
      %15 = arith.addf %12, %14 : vector<16x128xf32>
      %c0_14 = arith.constant 0 : index
      %c0_15 = arith.constant 0 : index
      %16 = vector.load %arg6[%c0_14, %c0_15] : memref<16x128xf32, #tpu.memory_space<vmem>>, vector<16x128xf32>
      tpu.vector_store %arg6[%c0_14, %c0_15], %15 {strides = array<i32>} : memref<16x128xf32, #tpu.memory_space<vmem>>, vector<16x128xf32>,
    } else {
    }
    return
  }
  func.func @transform_0(%arg0: i32, %arg1: i32, %arg2: i32) -> (i32, i32) {
    %c0_i32 = arith.constant 0 : i32
    return %arg0, %arg2 : i32, i32
  }
  func.func @transform_1(%arg0: i32, %arg1: i32, %arg2: i32) -> (i32, i32) {
    %c0_i32 = arith.constant 0 : i32
    return %arg2, %arg1 : i32, i32
  }
  func.func @transform_2(%arg0: i32, %arg1: i32, %arg2: i32) -> (i32, i32) {
    %c0_i32 = arith.constant 0 : i32
    %c0_i32_0 = arith.constant 0 : i32
    return %c0_i32, %arg1 : i32, i32
  }
  func.func @transform_3(%arg0: i32, %arg1: i32, %arg2: i32) -> (i32, i32) {
    %c0_i32 = arith.constant 0 : i32
    return %arg0, %arg1 : i32, i32
  }
}

</mosaic_0001>

<llo_original>
// kernel: lstm_language_model_forward.5
$region0: #{lstm_language_model_forward.5}
  #allocation0 [shape = 'u32[]', space=smem, size = 0x4, offset = 0x4, fixed_abs, tag = 'smem constant byte address 0x4 - core index']
  #allocation1 [shape = 'u32[144,128]{1,0:T(1,128)}', space=vmem, size = 0x12000, scoped, tag = 'internal scratch']
  #allocation2 [shape = 'f32[16,128]{1,0:T(8,128)}', space=vmem, size = 0x2000, scoped, tag = 'scratch operand']
  %s0 = inlined_call_operand.vmem [shape: f32[16,128], index: 0, kind: input, shape index: {}]
  %s1 = inlined_call_operand.vmem [shape: f32[128,128], index: 1, kind: input, shape index: {}]
  %s2 = inlined_call_operand.vmem [shape: f32[1,128], index: 2, kind: input, shape index: {}]
  %s3 = inlined_call_operand.hbm [shape: f32[16,128], index: 3, kind: output, shape index: {}]
  %s4 = sld [smem:[#allocation0]]
  $region30: #{lstm_language_model_forward.5} parent=0
    _
  %s6 = ssub.s32 1, %s4
  %s7 = scalar_select 0, %s6, %s4
  $region1: #{lstm_language_model_forward.5} parent=0
    #allocation3 [shape = 'u8[8192]{0}', space=vmem, size = 0x2000, scoped, tag = 'output window, operand 0, single buffered']
    #allocation4 [shape = 's32[1]{0}', space=sflag, size = 0x4, scoped, tag = 'scoped memory for lstm_language_model_forward.5']
    %8 = vsyncpa [#allocation4], 0
    // Predicated region
    $region2: #{lstm_language_model_forward.5} parent=1 // pred_check
      _
    $region3: #{lstm_language_model_forward.5} parent=1 // pred_check_branch
      %10 = sbr.rel (0) target = $region5
    $region4: #{lstm_language_model_forward.5} parent=1 // pred_region
      _
    $region5: #{lstm_language_model_forward.5} parent=1 // pred_fallthru
      _
    // Predicated region
    $region6: #{lstm_language_model_forward.5} parent=1 // pred_check
      _
    $region7: #{lstm_language_model_forward.5} parent=1 // pred_check_branch
      %12 = sbr.rel (0) target = $region9
    $region8: #{lstm_language_model_forward.5} parent=1 // pred_region
      _
    $region9: #{lstm_language_model_forward.5} parent=1 // pred_fallthru
      _
    // Predicated region
    $region10: #{lstm_language_model_forward.5} parent=1 // pred_check
      _
    $region11: #{lstm_language_model_forward.5} parent=1 // pred_check_branch
      %14 = sbr.rel (0) target = $region13
    $region12: #{lstm_language_model_forward.5} parent=1 // pred_region
      _
    $region13: #{lstm_language_model_forward.5} parent=1 // pred_fallthru
      _
    %p15 = scmp.eq.s32.totalorder 0, 0
    // Predicated region
    $region14: #{lstm_language_model_forward.5} parent=1 // pred_check
      %p16 = pneg %p15
    $region15: #{lstm_language_model_forward.5} parent=1 // pred_check_branch
      %18 = sbr.rel (%p16) target = $region17
    $region16: #{lstm_language_model_forward.5} parent=1 // pred_region
      %19 = vst [vmem:[#allocation2] sm:$0xff] 0.0
      %20 = vst [vmem:[#allocation2 + $0x8] sm:$0xff] 0.0
    $region17: #{lstm_language_model_forward.5} parent=1 // pred_fallthru
      _
    %v21 = vld [vmem:[#allocation2] sm:$0xff]
    %v22 = vld [vmem:[#allocation2 + $0x8] sm:$0xff]
    %v23 = vld [vmem:[%s0] sm:$0xff]
    %v24 = vld [vmem:[%s0 + $0x8] sm:$0xff]
    %v25 = vld [vmem:[%s1] sm:$0xff]
    %v26 = vld [vmem:[%s1 + $0x8] sm:$0xff]
    %v27 = vld [vmem:[%s1 + $0x10] sm:$0xff]
    %v28 = vld [vmem:[%s1 + $0x18] sm:$0xff]
    %v29 = vld [vmem:[%s1 + $0x20] sm:$0xff]
    %v30 = vld [vmem:[%s1 + $0x28] sm:$0xff]
    %v31 = vld [vmem:[%s1 + $0x30] sm:$0xff]
    %v32 = vld [vmem:[%s1 + $0x38] sm:$0xff]
    %v33 = vld [vmem:[%s1 + $0x40] sm:$0xff]
    %v34 = vld [vmem:[%s1 + $0x48] sm:$0xff]
    %v35 = vld [vmem:[%s1 + $0x50] sm:$0xff]
    %v36 = vld [vmem:[%s1 + $0x58] sm:$0xff]
    %v37 = vld [vmem:[%s1 + $0x60] sm:$0xff]
    %v38 = vld [vmem:[%s1 + $0x68] sm:$0xff]
    %v39 = vld [vmem:[%s1 + $0x70] sm:$0xff]
    %v40 = vld [vmem:[%s1 + $0x78] sm:$0xff]
    %41 = vmatprep.subr.mxu0 0.0
    %42 = vmatpush1.msra.mxu0 %v40
    %43 = vmatprep.subr.mxu0 0.0
    %44 = vmatpush1.msra.mxu0 %v39
    %45 = vmatprep.subr.mxu0 0.0
    %46 = vmatpush1.msra.mxu0 %v38
    %47 = vmatprep.subr.mxu0 0.0
    %48 = vmatpush1.msra.mxu0 %v37
    %49 = vmatprep.subr.mxu0 0.0
    %50 = vmatpush1.msra.mxu0 %v36
    %51 = vmatprep.subr.mxu0 0.0
    %52 = vmatpush1.msra.mxu0 %v35
    %53 = vmatprep.subr.mxu0 0.0
    %54 = vmatpush1.msra.mxu0 %v34
    %55 = vmatprep.subr.mxu0 0.0
    %56 = vmatpush1.msra.mxu0 %v33
    %57 = vmatprep.subr.mxu0 0.0
    %58 = vmatpush1.msra.mxu0 %v32
    %59 = vmatprep.subr.mxu0 0.0
    %60 = vmatpush1.msra.mxu0 %v31
    %61 = vmatprep.subr.mxu0 0.0
    %62 = vmatpush1.msra.mxu0 %v30
    %63 = vmatprep.subr.mxu0 0.0
    %64 = vmatpush1.msra.mxu0 %v29
    %65 = vmatprep.subr.mxu0 0.0
    %66 = vmatpush1.msra.mxu0 %v28
    %67 = vmatprep.subr.mxu0 0.0
    %68 = vmatpush1.msra.mxu0 %v27
    %69 = vmatprep.subr.mxu0 0.0
    %70 = vmatpush1.msra.mxu0 %v26
    %71 = vmatprep.subr.mxu0 0.0
    %72 = vmatpush1.msra.mxu0 %v25
    %73 = vmatprep.subr.mxu0 0.0
    %74 = vmatpush2.msra.mxu0 0.0
    %75 = vmatprep.subr.mxu0 0.0
    %76 = vmatpush2.msra.mxu0 0.0
    %77 = vmatprep.subr.mxu0 0.0
    %78 = vmatpush2.msra.mxu0 0.0
    %79 = vmatprep.subr.mxu0 0.0
    %80 = vmatpush2.msra.mxu0 0.0
    %81 = vmatprep.subr.mxu0 0.0
    %82 = vmatpush2.msra.mxu0 0.0
    %83 = vmatprep.subr.mxu0 0.0
    %84 = vmatpush2.msra.mxu0 0.0
    %85 = vmatprep.subr.mxu0 0.0
    %86 = vmatpush2.msra.mxu0 0.0
    %87 = vmatprep.subr.mxu0 0.0
    %88 = vmatpush2.msra.mxu0 0.0
    %89 = vmatprep.subr.mxu0 0.0
    %90 = vmatpush2.msra.mxu0 0.0
    %91 = vmatprep.subr.mxu0 0.0
    %92 = vmatpush2.msra.mxu0 0.0
    %93 = vmatprep.subr.mxu0 0.0
    %94 = vmatpush2.msra.mxu0 0.0
    %95 = vmatprep.subr.mxu0 0.0
    %96 = vmatpush2.msra.mxu0 0.0
    %97 = vmatprep.subr.mxu0 0.0
    %98 = vmatpush2.msra.mxu0 0.0
    %99 = vmatprep.subr.mxu0 0.0
    %100 = vmatpush2.msra.mxu0 0.0
    %101 = vmatprep.subr.mxu0 0.0
    %102 = vmatpush2.msra.mxu0 0.0
    %103 = vmatprep.subr.mxu0 0.0
    %104 = vmatpush2.msra.mxu0 0.0
    %105 = vmatprep.mubr.f32.mxu0 0.0
    %106 = vmatmul.mubr.f32.gmra.mxu0 %v23
    %v107 = vpop.f32.mrf.mxu0
    %v108 = vadd.f32 0.0, %v107
    %v109 = vpop.f32.mrf.mxu0
    %110 = vmatprep.mubr.f32.mxu0 0.0
    %111 = vmatmul.mubr.f32.gmra.mxu0 %v24
    %v112 = vpop.f32.mrf.mxu0
    %v113 = vadd.f32 0.0, %v112
    %v114 = vpop.f32.mrf.mxu0
    %115 = vdwg.mxu0
    %v116 = vadd.f32 %v21, %v108
    %v117 = vadd.f32 %v22, %v113
    %118 = vst [vmem:[#allocation2] sm:$0xff] %v116
    %119 = vst [vmem:[#allocation2 + $0x8] sm:$0xff] %v117
    // Predicated region
    $region18: #{lstm_language_model_forward.5} parent=1 // pred_check
      %p120 = pneg %p15
    $region19: #{lstm_language_model_forward.5} parent=1 // pred_check_branch
      %122 = sbr.rel (%p120) target = $region21
    $region20: #{lstm_language_model_forward.5} parent=1 // pred_region
      %v123 = vld [vmem:[#allocation2] sm:$0xff]
      %v124 = vld [vmem:[#allocation2 + $0x8] sm:$0xff]
      %v125 = vld [vmem:[%s2] sm:$0x1]
      %v127 = vlaneseq
      %v128 = vshrl.u32 %v127, 7
      %v129 = vsub.s32 0, %v128
      %v130 = vrot.slane %v125, %v129
      %v132 = vadd.f32 %v123, %v130
      %v133 = vadd.f32 %v124, %v130
      %134 = vst [vmem:[#allocation3] sm:$0xff] %v132
      %135 = vst [vmem:[#allocation3 + $0x8] sm:$0xff] %v133
    $region21: #{lstm_language_model_forward.5} parent=1 // pred_fallthru
      _
    // Predicated region
    $region22: #{lstm_language_model_forward.5} parent=1 // pred_check
      _
    $region23: #{lstm_language_model_forward.5} parent=1 // pred_check_branch
      %137 = sbr.rel (0) target = $region25
    $region24: #{lstm_language_model_forward.5} parent=1 // pred_region
      %s139 = ssub.s32 256, 256
      %140 = vsyncadd [#allocation4], %s139
      %s141 = sshll.u32 [#allocation3], 4
      %s142 = int_to_ptr.vmem [resolvable:$true] %s141
      %147 = dma.vmem_to_hbm [thread:$0]  %s142, 256, %s3, [#allocation4], 128, 128, 8
    $region25: #{lstm_language_model_forward.5} parent=1 // pred_fallthru
      _
    // Predicated region
    $region26: #{lstm_language_model_forward.5} parent=1 // pred_check
      _
    $region27: #{lstm_language_model_forward.5} parent=1 // pred_check_branch
      %149 = sbr.rel (0) target = $region29
    $region28: #{lstm_language_model_forward.5} parent=1 // pred_region
      %150 = dma.done [#allocation4], 256
    $region29: #{lstm_language_model_forward.5} parent=1 // pred_fallthru
      _
    %151 = vsyncpa [#allocation4], 1

// kernel: lstm_language_model_forward.3
$region0: #{lstm_language_model_forward.3}
  #allocation0 [shape = 'u32[]', space=smem, size = 0x4, offset = 0x4, fixed_abs, tag = 'smem constant byte address 0x4 - core index']
  #allocation1 [shape = 'u32[144,128]{1,0:T(1,128)}', space=vmem, size = 0x12000, scoped, tag = 'internal scratch']
  #allocation2 [shape = 'f32[2,32]{1,0:T(2,128)}', space=vmem, size = 0x400, scoped, tag = 'scratch operand']
  #allocation3 [shape = 'f32[2,32]{1,0:T(2,128)}', space=vmem, size = 0x400, scoped, tag = 'scratch operand']
  %s0 = inlined_call_operand.vmem [shape: f32[8,2,32], index: 0, kind: input, shape index: {}]
  %s1 = inlined_call_operand.vmem [shape: f32[32,128], index: 1, kind: input, shape index: {}]
  %s2 = inlined_call_operand.vmem [shape: f32[32,128], index: 2, kind: input, shape index: {}]
  %s3 = inlined_call_operand.vmem [shape: f32[1,128], index: 3, kind: input, shape index: {}]
  %s4 = inlined_call_operand.vmem [shape: f32[2,32], index: 4, kind: input, shape index: {}]
  %s5 = inlined_call_operand.vmem [shape: f32[2,32], index: 5, kind: input, shape index: {}]
  %s6 = inlined_call_operand.vmem [shape: f32[8,2,32], index: 6, kind: output, shape index: {0}]
  %s7 = inlined_call_operand.vmem [shape: f32[2,32], index: 7, kind: output, shape index: {1}]
  %s8 = inlined_call_operand.vmem [shape: f32[2,32], index: 8, kind: output, shape index: {2}]
  %9 = xla_tuple %s6, %s7, %s8
  %s10 = sld [smem:[#allocation0]]
  $region58: #{lstm_language_model_forward.3} parent=0
    _
  %s12 = ssub.s32 1, %s10
  %s13 = scalar_select 0, %s12, %s10
  // Predicated region
  $region2: #{lstm_language_model_forward.3} parent=0 // pred_check
    _
  $region3: #{lstm_language_model_forward.3} parent=0 // pred_check_branch
    %15 = sbr.rel (0) target = $region5
  $region4: #{lstm_language_model_forward.3} parent=0 // pred_region
    _
  $region5: #{lstm_language_model_forward.3} parent=0 // pred_fallthru
    _
  // Predicated region
  $region6: #{lstm_language_model_forward.3} parent=0 // pred_check
    _
  $region7: #{lstm_language_model_forward.3} parent=0 // pred_check_branch
    %17 = sbr.rel (0) target = $region9
  $region8: #{lstm_language_model_forward.3} parent=0 // pred_region
    _
  $region9: #{lstm_language_model_forward.3} parent=0 // pred_fallthru
    _
  // Predicated region
  $region10: #{lstm_language_model_forward.3} parent=0 // pred_check
    _
  $region11: #{lstm_language_model_forward.3} parent=0 // pred_check_branch
    %19 = sbr.rel (0) target = $region13
  $region12: #{lstm_language_model_forward.3} parent=0 // pred_region
    _
  $region13: #{lstm_language_model_forward.3} parent=0 // pred_fallthru
    _
  // Predicated region
  $region14: #{lstm_language_model_forward.3} parent=0 // pred_check
    _
  $region15: #{lstm_language_model_forward.3} parent=0 // pred_check_branch
    %21 = sbr.rel (0) target = $region17
  $region16: #{lstm_language_model_forward.3} parent=0 // pred_region
    _
  $region17: #{lstm_language_model_forward.3} parent=0 // pred_fallthru
    _
  // Predicated region
  $region18: #{lstm_language_model_forward.3} parent=0 // pred_check
    _
  $region19: #{lstm_language_model_forward.3} parent=0 // pred_check_branch
    %23 = sbr.rel (0) target = $region21
  $region20: #{lstm_language_model_forward.3} parent=0 // pred_region
    _
  $region21: #{lstm_language_model_forward.3} parent=0 // pred_fallthru
    _
  // Predicated region
  $region22: #{lstm_language_model_forward.3} parent=0 // pred_check
    _
  $region23: #{lstm_language_model_forward.3} parent=0 // pred_check_branch
    %25 = sbr.rel (0) target = $region25
  $region24: #{lstm_language_model_forward.3} parent=0 // pred_region
    _
  $region25: #{lstm_language_model_forward.3} parent=0 // pred_fallthru
    _
  %p26 = scmp.eq.s32.totalorder 0, 0
  // Predicated region
  $region26: #{lstm_language_model_forward.3} parent=0 // pred_check
    %p27 = pneg %p26
  $region27: #{lstm_language_model_forward.3} parent=0 // pred_check_branch
    %29 = sbr.rel (%p27) target = $region29
  $region28: #{lstm_language_model_forward.3} parent=0 // pred_region
    %v30 = vld [vmem:[%s4] sm:$0x3]
    %vm31 = vcmask 254976
    %32 = vst.msk [vmem:[#allocation2] sm:$0x3] %vm31, %v30
    %v33 = vld [vmem:[%s5] sm:$0x3]
    %34 = vst.msk [vmem:[#allocation3] sm:$0x3] %vm31, %v33
  $region29: #{lstm_language_model_forward.3} parent=0 // pred_fallthru
    _
  %v35 = vld [vmem:[%s3] sm:$0x1]
  %v36 = vld [vmem:[#allocation2] sm:$0x3]
  %v37 = vld [vmem:[#allocation3] sm:$0x3]
  %v38 = vld [vmem:[%s0] sm:$0x3]
  %v39 = vld [vmem:[%s1] sm:$0xff]
  %v40 = vld [vmem:[%s1 + $0x8] sm:$0xff]
  %v41 = vld [vmem:[%s1 + $0x10] sm:$0xff]
  %v42 = vld [vmem:[%s1 + $0x18] sm:$0xff]
  %v43 = vld [vmem:[%s2] sm:$0xff]
  %v44 = vld [vmem:[%s2 + $0x8] sm:$0xff]
  %v45 = vld [vmem:[%s2 + $0x10] sm:$0xff]
  %v46 = vld [vmem:[%s2 + $0x18] sm:$0xff]
  %vm47 = vcmask 261120
  %v49 = vsel %vm47, %v36, 0
  %51 = vmatprep.subr.mxu0 0.0
  %52 = vmatpush1.msra.mxu0 0.0
  %53 = vmatprep.subr.mxu0 0.0
  %54 = vmatpush1.msra.mxu0 0.0
  %55 = vmatprep.subr.mxu0 0.0
  %56 = vmatpush1.msra.mxu0 0.0
  %57 = vmatprep.subr.mxu0 0.0
  %58 = vmatpush1.msra.mxu0 0.0
  %59 = vmatprep.subr.mxu0 0.0
  %60 = vmatpush1.msra.mxu0 0.0
  %61 = vmatprep.subr.mxu0 0.0
  %62 = vmatpush1.msra.mxu0 0.0
  %63 = vmatprep.subr.mxu0 0.0
  %64 = vmatpush1.msra.mxu0 0.0
  %65 = vmatprep.subr.mxu0 0.0
  %66 = vmatpush1.msra.mxu0 0.0
  %67 = vmatprep.subr.mxu0 0.0
  %68 = vmatpush1.msra.mxu0 0.0
  %69 = vmatprep.subr.mxu0 0.0
  %70 = vmatpush1.msra.mxu0 0.0
  %71 = vmatprep.subr.mxu0 0.0
  %72 = vmatpush1.msra.mxu0 0.0
  %73 = vmatprep.subr.mxu0 0.0
  %74 = vmatpush1.msra.mxu0 0.0
  %75 = vmatprep.subr.mxu0 0.0
  %76 = vmatpush1.msra.mxu0 %v46
  %77 = vmatprep.subr.mxu0 0.0
  %78 = vmatpush1.msra.mxu0 %v45
  %79 = vmatprep.subr.mxu0 0.0
  %80 = vmatpush1.msra.mxu0 %v44
  %81 = vmatprep.subr.mxu0 0.0
  %82 = vmatpush1.msra.mxu0 %v43
  %83 = vmatprep.subr.mxu0 0.0
  %84 = vmatpush2.msra.mxu0 0.0
  %85 = vmatprep.subr.mxu0 0.0
  %86 = vmatpush2.msra.mxu0 0.0
  %87 = vmatprep.subr.mxu0 0.0
  %88 = vmatpush2.msra.mxu0 0.0
  %89 = vmatprep.subr.mxu0 0.0
  %90 = vmatpush2.msra.mxu0 0.0
  %91 = vmatprep.subr.mxu0 0.0
  %92 = vmatpush2.msra.mxu0 0.0
  %93 = vmatprep.subr.mxu0 0.0
  %94 = vmatpush2.msra.mxu0 0.0
  %95 = vmatprep.subr.mxu0 0.0
  %96 = vmatpush2.msra.mxu0 0.0
  %97 = vmatprep.subr.mxu0 0.0
  %98 = vmatpush2.msra.mxu0 0.0
  %99 = vmatprep.subr.mxu0 0.0
  %100 = vmatpush2.msra.mxu0 0.0
  %101 = vmatprep.subr.mxu0 0.0
  %102 = vmatpush2.msra.mxu0 0.0
  %103 = vmatprep.subr.mxu0 0.0
  %104 = vmatpush2.msra.mxu0 0.0
  %105 = vmatprep.subr.mxu0 0.0
  %106 = vmatpush2.msra.mxu0 0.0
  %107 = vmatprep.subr.mxu0 0.0
  %108 = vmatpush2.msra.mxu0 0.0
  %109 = vmatprep.subr.mxu0 0.0
  %110 = vmatpush2.msra.mxu0 0.0
  %111 = vmatprep.subr.mxu0 0.0
  %112 = vmatpush2.msra.mxu0 0.0
  %113 = vmatprep.subr.mxu0 0.0
  %114 = vmatpush2.msra.mxu0 0.0
  %115 = vmatprep.mubr.f32.mxu0 0.0
  %116 = vmatmul.mubr.f32.gmra.mxu0 %v49
  %v117 = vpop.f32.mrf.mxu0
  %v118 = vadd.f32 0.0, %v117
  %v119 = vpop.f32.mrf.mxu0
  %120 = vdwg.mxu0
  %v122 = vsel %vm47, %v38, 0
  %124 = vmatprep.subr.mxu0 0.0
  %125 = vmatpush1.msra.mxu0 0.0
  %126 = vmatprep.subr.mxu0 0.0
  %127 = vmatpush1.msra.mxu0 0.0
  %128 = vmatprep.subr.mxu0 0.0
  %129 = vmatpush1.msra.mxu0 0.0
  %130 = vmatprep.subr.mxu0 0.0
  %131 = vmatpush1.msra.mxu0 0.0
  %132 = vmatprep.subr.mxu0 0.0
  %133 = vmatpush1.msra.mxu0 0.0
  %134 = vmatprep.subr.mxu0 0.0
  %135 = vmatpush1.msra.mxu0 0.0
  %136 = vmatprep.subr.mxu0 0.0
  %137 = vmatpush1.msra.mxu0 0.0
  %138 = vmatprep.subr.mxu0 0.0
  %139 = vmatpush1.msra.mxu0 0.0
  %140 = vmatprep.subr.mxu0 0.0
  %141 = vmatpush1.msra.mxu0 0.0
  %142 = vmatprep.subr.mxu0 0.0
  %143 = vmatpush1.msra.mxu0 0.0
  %144 = vmatprep.subr.mxu0 0.0
  %145 = vmatpush1.msra.mxu0 0.0
  %146 = vmatprep.subr.mxu0 0.0
  %147 = vmatpush1.msra.mxu0 0.0
  %148 = vmatprep.subr.mxu0 0.0
  %149 = vmatpush1.msra.mxu0 %v42
  %150 = vmatprep.subr.mxu0 0.0
  %151 = vmatpush1.msra.mxu0 %v41
  %152 = vmatprep.subr.mxu0 0.0
  %153 = vmatpush1.msra.mxu0 %v40
  %154 = vmatprep.subr.mxu0 0.0
  %155 = vmatpush1.msra.mxu0 %v39
  %156 = vmatprep.subr.mxu0 0.0
  %157 = vmatpush2.msra.mxu0 0.0
  %158 = vmatprep.subr.mxu0 0.0
  %159 = vmatpush2.msra.mxu0 0.0
  %160 = vmatprep.subr.mxu0 0.0
  %161 = vmatpush2.msra.mxu0 0.0
  %162 = vmatprep.subr.mxu0 0.0
  %163 = vmatpush2.msra.mxu0 0.0
  %164 = vmatprep.subr.mxu0 0.0
  %165 = vmatpush2.msra.mxu0 0.0
  %166 = vmatprep.subr.mxu0 0.0
  %167 = vmatpush2.msra.mxu0 0.0
  %168 = vmatprep.subr.mxu0 0.0
  %169 = vmatpush2.msra.mxu0 0.0
  %170 = vmatprep.subr.mxu0 0.0
  %171 = vmatpush2.msra.mxu0 0.0
  %172 = vmatprep.subr.mxu0 0.0
  %173 = vmatpush2.msra.mxu0 0.0
  %174 = vmatprep.subr.mxu0 0.0
  %175 = vmatpush2.msra.mxu0 0.0
  %176 = vmatprep.subr.mxu0 0.0
  %177 = vmatpush2.msra.mxu0 0.0
  %178 = vmatprep.subr.mxu0 0.0
  %179 = vmatpush2.msra.mxu0 0.0
  %180 = vmatprep.subr.mxu0 0.0
  %181 = vmatpush2.msra.mxu0 0.0
  %182 = vmatprep.subr.mxu0 0.0
  %183 = vmatpush2.msra.mxu0 0.0
  %184 = vmatprep.subr.mxu0 0.0
  %185 = vmatpush2.msra.mxu0 0.0
  %186 = vmatprep.subr.mxu0 0.0
  %187 = vmatpush2.msra.mxu0 0.0
  %188 = vmatprep.mubr.f32.mxu0 0.0
  %189 = vmatmul.mubr.f32.gmra.mxu0 %v122
  %v190 = vpop.f32.mrf.mxu0
  %v191 = vadd.f32 %v118, %v190
  %v192 = vpop.f32.mrf.mxu0
  %193 = vdwg.mxu0
  %v195 = vlaneseq
  %v196 = vshrl.u32 %v195, 7
  %v197 = vsub.s32 0, %v196
  %v198 = vrot.slane %v35, %v197
  %v200 = vadd.f32 %v191, %v198
  %v201 = vxor.u32 %v200, 2147483648
  %v202 = vmul.f32 %v201, 1.442695
  %v203 = vpow.pop %v202
  %v204 = vadd.f32 %v203, 1.0
  %v205 = vrcp.pop %v204
  %v206 = vmul.f32 1.0, %v205
  %v207 = vtanh.pop %v200
  %209 = vrot.lane.b32.xlu0 %v37, 32
  %v210 = vpop.permute.xlu0 %209
  %v212 = vmul.f32 %v206, %v210
  %214 = vrot.lane.b32.xlu0 %v207, 64
  %v215 = vpop.permute.xlu0 %214
  %v217 = vmul.f32 %v206, %v215
  %219 = vrot.lane.b32.xlu0 %v217, 32
  %v220 = vpop.permute.xlu0 %219
  %v222 = vadd.f32 %v212, %v220
  %v223 = vtanh.pop %v222
  %225 = vrot.lane.b32.xlu0 %v223, 64
  %v226 = vpop.permute.xlu0 %225
  %v228 = vmul.f32 %v206, %v226
  %230 = vrot.lane.b32.xlu0 %v228, 32
  %v231 = vpop.permute.xlu0 %230
  %vm233 = vcmask 254976
  %234 = vst.msk [vmem:[%s6] sm:$0x3] %vm233, %v231
  %s235 = scalar_lea.vmem %s0, 2
  %v236 = vld [vmem:[%s235] sm:$0x3]
  %v237 = vld [vmem:[%s1] sm:$0xff]
  %v238 = vld [vmem:[%s1 + $0x8] sm:$0xff]
  %v239 = vld [vmem:[%s1 + $0x10] sm:$0xff]
  %v240 = vld [vmem:[%s1 + $0x18] sm:$0xff]
  %v241 = vld [vmem:[%s2] sm:$0xff]
  %v242 = vld [vmem:[%s2 + $0x8] sm:$0xff]
  %v243 = vld [vmem:[%s2 + $0x10] sm:$0xff]
  %v244 = vld [vmem:[%s2 + $0x18] sm:$0xff]
  %v245 = vsel %vm47, %v231, 0
  %247 = vmatprep.subr.mxu0 0.0
  %248 = vmatpush1.msra.mxu0 0.0
  %249 = vmatprep.subr.mxu0 0.0
  %250 = vmatpush1.msra.mxu0 0.0
  %251 = vmatprep.subr.mxu0 0.0
  %252 = vmatpush1.msra.mxu0 0.0
  %253 = vmatprep.subr.mxu0 0.0
  %254 = vmatpush1.msra.mxu0 0.0
  %255 = vmatprep.subr.mxu0 0.0
  %256 = vmatpush1.msra.mxu0 0.0
  %257 = vmatprep.subr.mxu0 0.0
  %258 = vmatpush1.msra.mxu0 0.0
  %259 = vmatprep.subr.mxu0 0.0
  %260 = vmatpush1.msra.mxu0 0.0
  %261 = vmatprep.subr.mxu0 0.0
  %262 = vmatpush1.msra.mxu0 0.0
  %263 = vmatprep.subr.mxu0 0.0
  %264 = vmatpush1.msra.mxu0 0.0
  %265 = vmatprep.subr.mxu0 0.0
  %266 = vmatpush1.msra.mxu0 0.0
  %267 = vmatprep.subr.mxu0 0.0
  %268 = vmatpush1.msra.mxu0 0.0
  %269 = vmatprep.subr.mxu0 0.0
  %270 = vmatpush1.msra.mxu0 0.0
  %271 = vmatprep.subr.mxu0 0.0
  %272 = vmatpush1.msra.mxu0 %v244
  %273 = vmatprep.subr.mxu0 0.0
  %274 = vmatpush1.msra.mxu0 %v243
  %275 = vmatprep.subr.mxu0 0.0
  %276 = vmatpush1.msra.mxu0 %v242
  %277 = vmatprep.subr.mxu0 0.0
  %278 = vmatpush1.msra.mxu0 %v241
  %279 = vmatprep.subr.mxu0 0.0
  %280 = vmatpush2.msra.mxu0 0.0
  %281 = vmatprep.subr.mxu0 0.0
  %282 = vmatpush2.msra.mxu0 0.0
  %283 = vmatprep.subr.mxu0 0.0
  %284 = vmatpush2.msra.mxu0 0.0
  %285 = vmatprep.subr.mxu0 0.0
  %286 = vmatpush2.msra.mxu0 0.0
  %287 = vmatprep.subr.mxu0 0.0
  %288 = vmatpush2.msra.mxu0 0.0
  %289 = vmatprep.subr.mxu0 0.0
  %290 = vmatpush2.msra.mxu0 0.0
  %291 = vmatprep.subr.mxu0 0.0
  %292 = vmatpush2.msra.mxu0 0.0
  %293 = vmatprep.subr.mxu0 0.0
  %294 = vmatpush2.msra.mxu0 0.0
  %295 = vmatprep.subr.mxu0 0.0
  %296 = vmatpush2.msra.mxu0 0.0
  %297 = vmatprep.subr.mxu0 0.0
  %298 = vmatpush2.msra.mxu0 0.0
  %299 = vmatprep.subr.mxu0 0.0
  %300 = vmatpush2.msra.mxu0 0.0
  %301 = vmatprep.subr.mxu0 0.0
  %302 = vmatpush2.msra.mxu0 0.0
  %303 = vmatprep.subr.mxu0 0.0
  %304 = vmatpush2.msra.mxu0 0.0
  %305 = vmatprep.subr.mxu0 0.0
  %306 = vmatpush2.msra.mxu0 0.0
  %307 = vmatprep.subr.mxu0 0.0
  %308 = vmatpush2.msra.mxu0 0.0
  %309 = vmatprep.subr.mxu0 0.0
  %310 = vmatpush2.msra.mxu0 0.0
  %311 = vmatprep.mubr.f32.mxu0 0.0
  %312 = vmatmul.mubr.f32.gmra.mxu0 %v245
  %v313 = vpop.f32.mrf.mxu0
  %v314 = vadd.f32 0.0, %v313
  %v315 = vpop.f32.mrf.mxu0
  %316 = vdwg.mxu0
  %v318 = vsel %vm47, %v236, 0
  %320 = vmatprep.subr.mxu0 0.0
  %321 = vmatpush1.msra.mxu0 0.0
  %322 = vmatprep.subr.mxu0 0.0
  %323 = vmatpush1.msra.mxu0 0.0
  %324 = vmatprep.subr.mxu0 0.0
  %325 = vmatpush1.msra.mxu0 0.0
  %326 = vmatprep.subr.mxu0 0.0
  %327 = vmatpush1.msra.mxu0 0.0
  %328 = vmatprep.subr.mxu0 0.0
  %329 = vmatpush1.msra.mxu0 0.0
  %330 = vmatprep.subr.mxu0 0.0
  %331 = vmatpush1.msra.mxu0 0.0
  %332 = vmatprep.subr.mxu0 0.0
  %333 = vmatpush1.msra.mxu0 0.0
  %334 = vmatprep.subr.mxu0 0.0
  %335 = vmatpush1.msra.mxu0 0.0
  %336 = vmatprep.subr.mxu0 0.0
  %337 = vmatpush1.msra.mxu0 0.0
  %338 = vmatprep.subr.mxu0 0.0
  %339 = vmatpush1.msra.mxu0 0.0
  %340 = vmatprep.subr.mxu0 0.0
  %341 = vmatpush1.msra.mxu0 0.0
  %342 = vmatprep.subr.mxu0 0.0
  %343 = vmatpush1.msra.mxu0 0.0
  %344 = vmatprep.subr.mxu0 0.0
  %345 = vmatpush1.msra.mxu0 %v240
  %346 = vmatprep.subr.mxu0 0.0
  %347 = vmatpush1.msra.mxu0 %v239
  %348 = vmatprep.subr.mxu0 0.0
  %349 = vmatpush1.msra.mxu0 %v238
  %350 = vmatprep.subr.mxu0 0.0
  %351 = vmatpush1.msra.mxu0 %v237
  %352 = vmatprep.subr.mxu0 0.0
  %353 = vmatpush2.msra.mxu0 0.0
  %354 = vmatprep.subr.mxu0 0.0
  %355 = vmatpush2.msra.mxu0 0.0
  %356 = vmatprep.subr.mxu0 0.0
  %357 = vmatpush2.msra.mxu0 0.0
  %358 = vmatprep.subr.mxu0 0.0
  %359 = vmatpush2.msra.mxu0 0.0
  %360 = vmatprep.subr.mxu0 0.0
  %361 = vmatpush2.msra.mxu0 0.0
  %362 = vmatprep.subr.mxu0 0.0
  %363 = vmatpush2.msra.mxu0 0.0
  %364 = vmatprep.subr.mxu0 0.0
  %365 = vmatpush2.msra.mxu0 0.0
  %366 = vmatprep.subr.mxu0 0.0
  %367 = vmatpush2.msra.mxu0 0.0
  %368 = vmatprep.subr.mxu0 0.0
  %369 = vmatpush2.msra.mxu0 0.0
  %370 = vmatprep.subr.mxu0 0.0
  %371 = vmatpush2.msra.mxu0 0.0
  %372 = vmatprep.subr.mxu0 0.0
  %373 = vmatpush2.msra.mxu0 0.0
  %374 = vmatprep.subr.mxu0 0.0
  %375 = vmatpush2.msra.mxu0 0.0
  %376 = vmatprep.subr.mxu0 0.0
  %377 = vmatpush2.msra.mxu0 0.0
  %378 = vmatprep.subr.mxu0 0.0
  %379 = vmatpush2.msra.mxu0 0.0
  %380 = vmatprep.subr.mxu0 0.0
  %381 = vmatpush2.msra.mxu0 0.0
  %382 = vmatprep.subr.mxu0 0.0
  %383 = vmatpush2.msra.mxu0 0.0
  %384 = vmatprep.mubr.f32.mxu0 0.0
  %385 = vmatmul.mubr.f32.gmra.mxu0 %v318
  %v386 = vpop.f32.mrf.mxu0
  %v387 = vadd.f32 %v314, %v386
  %v388 = vpop.f32.mrf.mxu0
  %389 = vdwg.mxu0
  %v390 = vadd.f32 %v387, %v198
  %v391 = vxor.u32 %v390, 2147483648
  %v392 = vmul.f32 %v391, 1.442695
  %v393 = vpow.pop %v392
  %v394 = vadd.f32 %v393, 1.0
  %v395 = vrcp.pop %v394
  %v396 = vmul.f32 1.0, %v395
  %v397 = vtanh.pop %v390
  %v398 = vmul.f32 %v396, %v222
  %400 = vrot.lane.b32.xlu0 %v397, 64
  %v401 = vpop.permute.xlu0 %400
  %v403 = vmul.f32 %v396, %v401
  %405 = vrot.lane.b32.xlu0 %v403, 32
  %v406 = vpop.permute.xlu0 %405
  %v408 = vadd.f32 %v398, %v406
  %v409 = vtanh.pop %v408
  %411 = vrot.lane.b32.xlu0 %v409, 64
  %v412 = vpop.permute.xlu0 %411
  %v414 = vmul.f32 %v396, %v412
  %416 = vrot.lane.b32.xlu0 %v414, 32
  %v417 = vpop.permute.xlu0 %416
  %s419 = scalar_lea.vmem %s6, 2
  %420 = vst.msk [vmem:[%s419] sm:$0x3] %vm233, %v417
  %s421 = scalar_lea.vmem %s0, 4
  %v422 = vld [vmem:[%s421] sm:$0x3]
  %v423 = vld [vmem:[%s1] sm:$0xff]
  %v424 = vld [vmem:[%s1 + $0x8] sm:$0xff]
  %v425 = vld [vmem:[%s1 + $0x10] sm:$0xff]
  %v426 = vld [vmem:[%s1 + $0x18] sm:$0xff]
  %v427 = vld [vmem:[%s2] sm:$0xff]
  %v428 = vld [vmem:[%s2 + $0x8] sm:$0xff]
  %v429 = vld [vmem:[%s2 + $0x10] sm:$0xff]
  %v430 = vld [vmem:[%s2 + $0x18] sm:$0xff]
  %v431 = vsel %vm47, %v417, 0
  %433 = vmatprep.subr.mxu0 0.0
  %434 = vmatpush1.msra.mxu0 0.0
  %435 = vmatprep.subr.mxu0 0.0
  %436 = vmatpush1.msra.mxu0 0.0
  %437 = vmatprep.subr.mxu0 0.0
  %438 = vmatpush1.msra.mxu0 0.0
  %439 = vmatprep.subr.mxu0 0.0
  %440 = vmatpush1.msra.mxu0 0.0
  %441 = vmatprep.subr.mxu0 0.0
  %442 = vmatpush1.msra.mxu0 0.0
  %443 = vmatprep.subr.mxu0 0.0
  %444 = vmatpush1.msra.mxu0 0.0
  %445 = vmatprep.subr.mxu0 0.0
  %446 = vmatpush1.msra.mxu0 0.0
  %447 = vmatprep.subr.mxu0 0.0
  %448 = vmatpush1.msra.mxu0 0.0
  %449 = vmatprep.subr.mxu0 0.0
  %450 = vmatpush1.msra.mxu0 0.0
  %451 = vmatprep.subr.mxu0 0.0
  %452 = vmatpush1.msra.mxu0 0.0
  %453 = vmatprep.subr.mxu0 0.0
  %454 = vmatpush1.msra.mxu0 0.0
  %455 = vmatprep.subr.mxu0 0.0
  %456 = vmatpush1.msra.mxu0 0.0
  %457 = vmatprep.subr.mxu0 0.0
  %458 = vmatpush1.msra.mxu0 %v430
  %459 = vmatprep.subr.mxu0 0.0
  %460 = vmatpush1.msra.mxu0 %v429
  %461 = vmatprep.subr.mxu0 0.0
  %462 = vmatpush1.msra.mxu0 %v428
  %463 = vmatprep.subr.mxu0 0.0
  %464 = vmatpush1.msra.mxu0 %v427
  %465 = vmatprep.subr.mxu0 0.0
  %466 = vmatpush2.msra.mxu0 0.0
  %467 = vmatprep.subr.mxu0 0.0
  %468 = vmatpush2.msra.mxu0 0.0
  %469 = vmatprep.subr.mxu0 0.0
  %470 = vmatpush2.msra.mxu0 0.0
  %471 = vmatprep.subr.mxu0 0.0
  %472 = vmatpush2.msra.mxu0 0.0
  %473 = vmatprep.subr.mxu0 0.0
  %474 = vmatpush2.msra.mxu0 0.0
  %475 = vmatprep.subr.mxu0 0.0
  %476 = vmatpush2.msra.mxu0 0.0
  %477 = vmatprep.subr.mxu0 0.0
  %478 = vmatpush2.msra.mxu0 0.0
  %479 = vmatprep.subr.mxu0 0.0
  %480 = vmatpush2.msra.mxu0 0.0
  %481 = vmatprep.subr.mxu0 0.0
  %482 = vmatpush2.msra.mxu0 0.0
  %483 = vmatprep.subr.mxu0 0.0
  %484 = vmatpush2.msra.mxu0 0.0
  %485 = vmatprep.subr.mxu0 0.0
  %486 = vmatpush2.msra.mxu0 0.0
  %487 = vmatprep.subr.mxu0 0.0
  %488 = vmatpush2.msra.mxu0 0.0
  %489 = vmatprep.subr.mxu0 0.0
  %490 = vmatpush2.msra.mxu0 0.0
  %491 = vmatprep.subr.mxu0 0.0
  %492 = vmatpush2.msra.mxu0 0.0
  %493 = vmatprep.subr.mxu0 0.0
  %494 = vmatpush2.msra.mxu0 0.0
  %495 = vmatprep.subr.mxu0 0.0
  %496 = vmatpush2.msra.mxu0 0.0
  %497 = vmatprep.mubr.f32.mxu0 0.0
  %498 = vmatmul.mubr.f32.gmra.mxu0 %v431
  %v499 = vpop.f32.mrf.mxu0
  %v500 = vadd.f32 0.0, %v499
  %v501 = vpop.f32.mrf.mxu0
  %502 = vdwg.mxu0
  %v504 = vsel %vm47, %v422, 0
  %506 = vmatprep.subr.mxu0 0.0
  %507 = vmatpush1.msra.mxu0 0.0
  %508 = vmatprep.subr.mxu0 0.0
  %509 = vmatpush1.msra.mxu0 0.0
  %510 = vmatprep.subr.mxu0 0.0
  %511 = vmatpush1.msra.mxu0 0.0
  %512 = vmatprep.subr.mxu0 0.0
  %513 = vmatpush1.msra.mxu0 0.0
  %514 = vmatprep.subr.mxu0 0.0
  %515 = vmatpush1.msra.mxu0 0.0
  %516 = vmatprep.subr.mxu0 0.0
  %517 = vmatpush1.msra.mxu0 0.0
  %518 = vmatprep.subr.mxu0 0.0
  %519 = vmatpush1.msra.mxu0 0.0
  %520 = vmatprep.subr.mxu0 0.0
  %521 = vmatpush1.msra.mxu0 0.0
  %522 = vmatprep.subr.mxu0 0.0
  %523 = vmatpush1.msra.mxu0 0.0
  %524 = vmatprep.subr.mxu0 0.0
  %525 = vmatpush1.msra.mxu0 0.0
  %526 = vmatprep.subr.mxu0 0.0
  %527 = vmatpush1.msra.mxu0 0.0
  %528 = vmatprep.subr.mxu0 0.0
  %529 = vmatpush1.msra.mxu0 0.0
  %530 = vmatprep.subr.mxu0 0.0
  %531 = vmatpush1.msra.mxu0 %v426
  %532 = vmatprep.subr.mxu0 0.0
  %533 = vmatpush1.msra.mxu0 %v425
  %534 = vmatprep.subr.mxu0 0.0
  %535 = vmatpush1.msra.mxu0 %v424
  %536 = vmatprep.subr.mxu0 0.0
  %537 = vmatpush1.msra.mxu0 %v423
  %538 = vmatprep.subr.mxu0 0.0
  %539 = vmatpush2.msra.mxu0 0.0
  %540 = vmatprep.subr.mxu0 0.0
  %541 = vmatpush2.msra.mxu0 0.0
  %542 = vmatprep.subr.mxu0 0.0
  %543 = vmatpush2.msra.mxu0 0.0
  %544 = vmatprep.subr.mxu0 0.0
  %545 = vmatpush2.msra.mxu0 0.0
  %546 = vmatprep.subr.mxu0 0.0
  %547 = vmatpush2.msra.mxu0 0.0
  %548 = vmatprep.subr.mxu0 0.0
  %549 = vmatpush2.msra.mxu0 0.0
  %550 = vmatprep.subr.mxu0 0.0
  %551 = vmatpush2.msra.mxu0 0.0
  %552 = vmatprep.subr.mxu0 0.0
  %553 = vmatpush2.msra.mxu0 0.0
  %554 = vmatprep.subr.mxu0 0.0
  %555 = vmatpush2.msra.mxu0 0.0
  %556 = vmatprep.subr.mxu0 0.0
  %557 = vmatpush2.msra.mxu0 0.0
  %558 = vmatprep.subr.mxu0 0.0
  %559 = vmatpush2.msra.mxu0 0.0
  %560 = vmatprep.subr.mxu0 0.0
  %561 = vmatpush2.msra.mxu0 0.0
  %562 = vmatprep.subr.mxu0 0.0
  %563 = vmatpush2.msra.mxu0 0.0
  %564 = vmatprep.subr.mxu0 0.0
  %565 = vmatpush2.msra.mxu0 0.0
  %566 = vmatprep.subr.mxu0 0.0
  %567 = vmatpush2.msra.mxu0 0.0
  %568 = vmatprep.subr.mxu0 0.0
  %569 = vmatpush2.msra.mxu0 0.0
  %570 = vmatprep.mubr.f32.mxu0 0.0
  %571 = vmatmul.mubr.f32.gmra.mxu0 %v504
  %v572 = vpop.f32.mrf.mxu0
  %v573 = vadd.f32 %v500, %v572
  %v574 = vpop.f32.mrf.mxu0
  %575 = vdwg.mxu0
  %v576 = vadd.f32 %v573, %v198
  %v577 = vxor.u32 %v576, 2147483648
  %v578 = vmul.f32 %v577, 1.442695
  %v579 = vpow.pop %v578
  %v580 = vadd.f32 %v579, 1.0
  %v581 = vrcp.pop %v580
  %v582 = vmul.f32 1.0, %v581
  %v583 = vtanh.pop %v576
  %v584 = vmul.f32 %v582, %v408
  %586 = vrot.lane.b32.xlu0 %v583, 64
  %v587 = vpop.permute.xlu0 %586
  %v589 = vmul.f32 %v582, %v587
  %591 = vrot.lane.b32.xlu0 %v589, 32
  %v592 = vpop.permute.xlu0 %591
  %v594 = vadd.f32 %v584, %v592
  %v595 = vtanh.pop %v594
  %597 = vrot.lane.b32.xlu0 %v595, 64
  %v598 = vpop.permute.xlu0 %597
  %v600 = vmul.f32 %v582, %v598
  %602 = vrot.lane.b32.xlu0 %v600, 32
  %v603 = vpop.permute.xlu0 %602
  %s605 = scalar_lea.vmem %s6, 4
  %606 = vst.msk [vmem:[%s605] sm:$0x3] %vm233, %v603
  %s607 = scalar_lea.vmem %s0, 6
  %v608 = vld [vmem:[%s607] sm:$0x3]
  %v609 = vld [vmem:[%s1] sm:$0xff]
  %v610 = vld [vmem:[%s1 + $0x8] sm:$0xff]
  %v611 = vld [vmem:[%s1 + $0x10] sm:$0xff]
  %v612 = vld [vmem:[%s1 + $0x18] sm:$0xff]
  %v613 = vld [vmem:[%s2] sm:$0xff]
  %v614 = vld [vmem:[%s2 + $0x8] sm:$0xff]
  %v615 = vld [vmem:[%s2 + $0x10] sm:$0xff]
  %v616 = vld [vmem:[%s2 + $0x18] sm:$0xff]
  %v617 = vsel %vm47, %v603, 0
  %619 = vmatprep.subr.mxu0 0.0
  %620 = vmatpush1.msra.mxu0 0.0
  %621 = vmatprep.subr.mxu0 0.0
  %622 = vmatpush1.msra.mxu0 0.0
  %623 = vmatprep.subr.mxu0 0.0
  %624 = vmatpush1.msra.mxu0 0.0
  %625 = vmatprep.subr.mxu0 0.0
  %626 = vmatpush1.msra.mxu0 0.0
  %627 = vmatprep.subr.mxu0 0.0
  %628 = vmatpush1.msra.mxu0 0.0
  %629 = vmatprep.subr.mxu0 0.0
  %630 = vmatpush1.msra.mxu0 0.0
  %631 = vmatprep.subr.mxu0 0.0
  %632 = vmatpush1.msra.mxu0 0.0
  %633 = vmatprep.subr.mxu0 0.0
  %634 = vmatpush1.msra.mxu0 0.0
  %635 = vmatprep.subr.mxu0 0.0
  %636 = vmatpush1.msra.mxu0 0.0
  %637 = vmatprep.subr.mxu0 0.0
  %638 = vmatpush1.msra.mxu0 0.0
  %639 = vmatprep.subr.mxu0 0.0
  %640 = vmatpush1.msra.mxu0 0.0
  %641 = vmatprep.subr.mxu0 0.0
  %642 = vmatpush1.msra.mxu0 0.0
  %643 = vmatprep.subr.mxu0 0.0
  %644 = vmatpush1.msra.mxu0 %v616
  %645 = vmatprep.subr.mxu0 0.0
  %646 = vmatpush1.msra.mxu0 %v615
  %647 = vmatprep.subr.mxu0 0.0
  %648 = vmatpush1.msra.mxu0 %v614
  %649 = vmatprep.subr.mxu0 0.0
  %650 = vmatpush1.msra.mxu0 %v613
  %651 = vmatprep.subr.mxu0 0.0
  %652 = vmatpush2.msra.mxu0 0.0
  %653 = vmatprep.subr.mxu0 0.0
  %654 = vmatpush2.msra.mxu0 0.0
  %655 = vmatprep.subr.mxu0 0.0
  %656 = vmatpush2.msra.mxu0 0.0
  %657 = vmatprep.subr.mxu0 0.0
  %658 = vmatpush2.msra.mxu0 0.0
  %659 = vmatprep.subr.mxu0 0.0
  %660 = vmatpush2.msra.mxu0 0.0
  %661 = vmatprep.subr.mxu0 0.0
  %662 = vmatpush2.msra.mxu0 0.0
  %663 = vmatprep.subr.mxu0 0.0
  %664 = vmatpush2.msra.mxu0 0.0
  %665 = vmatprep.subr.mxu0 0.0
  %666 = vmatpush2.msra.mxu0 0.0
  %667 = vmatprep.subr.mxu0 0.0
  %668 = vmatpush2.msra.mxu0 0.0
  %669 = vmatprep.subr.mxu0 0.0
  %670 = vmatpush2.msra.mxu0 0.0
  %671 = vmatprep.subr.mxu0 0.0
  %672 = vmatpush2.msra.mxu0 0.0
  %673 = vmatprep.subr.mxu0 0.0
  %674 = vmatpush2.msra.mxu0 0.0
  %675 = vmatprep.subr.mxu0 0.0
  %676 = vmatpush2.msra.mxu0 0.0
  %677 = vmatprep.subr.mxu0 0.0
  %678 = vmatpush2.msra.mxu0 0.0
  %679 = vmatprep.subr.mxu0 0.0
  %680 = vmatpush2.msra.mxu0 0.0
  %681 = vmatprep.subr.mxu0 0.0
  %682 = vmatpush2.msra.mxu0 0.0
  %683 = vmatprep.mubr.f32.mxu0 0.0
  %684 = vmatmul.mubr.f32.gmra.mxu0 %v617
  %v685 = vpop.f32.mrf.mxu0
  %v686 = vadd.f32 0.0, %v685
  %v687 = vpop.f32.mrf.mxu0
  %688 = vdwg.mxu0
  %v690 = vsel %vm47, %v608, 0
  %692 = vmatprep.subr.mxu0 0.0
  %693 = vmatpush1.msra.mxu0 0.0
  %694 = vmatprep.subr.mxu0 0.0
  %695 = vmatpush1.msra.mxu0 0.0
  %696 = vmatprep.subr.mxu0 0.0
  %697 = vmatpush1.msra.mxu0 0.0
  %698 = vmatprep.subr.mxu0 0.0
  %699 = vmatpush1.msra.mxu0 0.0
  %700 = vmatprep.subr.mxu0 0.0
  %701 = vmatpush1.msra.mxu0 0.0
  %702 = vmatprep.subr.mxu0 0.0
  %703 = vmatpush1.msra.mxu0 0.0
  %704 = vmatprep.subr.mxu0 0.0
  %705 = vmatpush1.msra.mxu0 0.0
  %706 = vmatprep.subr.mxu0 0.0
  %707 = vmatpush1.msra.mxu0 0.0
  %708 = vmatprep.subr.mxu0 0.0
  %709 = vmatpush1.msra.mxu0 0.0
  %710 = vmatprep.subr.mxu0 0.0
  %711 = vmatpush1.msra.mxu0 0.0
  %712 = vmatprep.subr.mxu0 0.0
  %713 = vmatpush1.msra.mxu0 0.0
  %714 = vmatprep.subr.mxu0 0.0
  %715 = vmatpush1.msra.mxu0 0.0
  %716 = vmatprep.subr.mxu0 0.0
  %717 = vmatpush1.msra.mxu0 %v612
  %718 = vmatprep.subr.mxu0 0.0
  %719 = vmatpush1.msra.mxu0 %v611
  %720 = vmatprep.subr.mxu0 0.0
  %721 = vmatpush1.msra.mxu0 %v610
  %722 = vmatprep.subr.mxu0 0.0
  %723 = vmatpush1.msra.mxu0 %v609
  %724 = vmatprep.subr.mxu0 0.0
  %725 = vmatpush2.msra.mxu0 0.0
  %726 = vmatprep.subr.mxu0 0.0
  %727 = vmatpush2.msra.mxu0 0.0
  %728 = vmatprep.subr.mxu0 0.0
  %729 = vmatpush2.msra.mxu0 0.0
  %730 = vmatprep.subr.mxu0 0.0
  %731 = vmatpush2.msra.mxu0 0.0
  %732 = vmatprep.subr.mxu0 0.0
  %733 = vmatpush2.msra.mxu0 0.0
  %734 = vmatprep.subr.mxu0 0.0
  %735 = vmatpush2.msra.mxu0 0.0
  %736 = vmatprep.subr.mxu0 0.0
  %737 = vmatpush2.msra.mxu0 0.0
  %738 = vmatprep.subr.mxu0 0.0
  %739 = vmatpush2.msra.mxu0 0.0
  %740 = vmatprep.subr.mxu0 0.0
  %741 = vmatpush2.msra.mxu0 0.0
  %742 = vmatprep.subr.mxu0 0.0
  %743 = vmatpush2.msra.mxu0 0.0
  %744 = vmatprep.subr.mxu0 0.0
  %745 = vmatpush2.msra.mxu0 0.0
  %746 = vmatprep.subr.mxu0 0.0
  %747 = vmatpush2.msra.mxu0 0.0
  %748 = vmatprep.subr.mxu0 0.0
  %749 = vmatpush2.msra.mxu0 0.0
  %750 = vmatprep.subr.mxu0 0.0
  %751 = vmatpush2.msra.mxu0 0.0
  %752 = vmatprep.subr.mxu0 0.0
  %753 = vmatpush2.msra.mxu0 0.0
  %754 = vmatprep.subr.mxu0 0.0
  %755 = vmatpush2.msra.mxu0 0.0
  %756 = vmatprep.mubr.f32.mxu0 0.0
  %757 = vmatmul.mubr.f32.gmra.mxu0 %v690
  %v758 = vpop.f32.mrf.mxu0
  %v759 = vadd.f32 %v686, %v758
  %v760 = vpop.f32.mrf.mxu0
  %761 = vdwg.mxu0
  %v762 = vadd.f32 %v759, %v198
  %v763 = vxor.u32 %v762, 2147483648
  %v764 = vmul.f32 %v763, 1.442695
  %v765 = vpow.pop %v764
  %v766 = vadd.f32 %v765, 1.0
  %v767 = vrcp.pop %v766
  %v768 = vmul.f32 1.0, %v767
  %v769 = vtanh.pop %v762
  %v770 = vmul.f32 %v768, %v594
  %772 = vrot.lane.b32.xlu0 %v769, 64
  %v773 = vpop.permute.xlu0 %772
  %v775 = vmul.f32 %v768, %v773
  %777 = vrot.lane.b32.xlu0 %v775, 32
  %v778 = vpop.permute.xlu0 %777
  %v780 = vadd.f32 %v770, %v778
  %v781 = vtanh.pop %v780
  %783 = vrot.lane.b32.xlu0 %v781, 64
  %v784 = vpop.permute.xlu0 %783
  %v786 = vmul.f32 %v768, %v784
  %788 = vrot.lane.b32.xlu0 %v786, 32
  %v789 = vpop.permute.xlu0 %788
  %s791 = scalar_lea.vmem %s6, 6
  %792 = vst.msk [vmem:[%s791] sm:$0x3] %vm233, %v789
  %s793 = scalar_lea.vmem %s0, 8
  %v794 = vld [vmem:[%s793] sm:$0x3]
  %v795 = vld [vmem:[%s1] sm:$0xff]
  %v796 = vld [vmem:[%s1 + $0x8] sm:$0xff]
  %v797 = vld [vmem:[%s1 + $0x10] sm:$0xff]
  %v798 = vld [vmem:[%s1 + $0x18] sm:$0xff]
  %v799 = vld [vmem:[%s2] sm:$0xff]
  %v800 = vld [vmem:[%s2 + $0x8] sm:$0xff]
  %v801 = vld [vmem:[%s2 + $0x10] sm:$0xff]
  %v802 = vld [vmem:[%s2 + $0x18] sm:$0xff]
  %v803 = vsel %vm47, %v789, 0
  %805 = vmatprep.subr.mxu0 0.0
  %806 = vmatpush1.msra.mxu0 0.0
  %807 = vmatprep.subr.mxu0 0.0
  %808 = vmatpush1.msra.mxu0 0.0
  %809 = vmatprep.subr.mxu0 0.0
  %810 = vmatpush1.msra.mxu0 0.0
  %811 = vmatprep.subr.mxu0 0.0
  %812 = vmatpush1.msra.mxu0 0.0
  %813 = vmatprep.subr.mxu0 0.0
  %814 = vmatpush1.msra.mxu0 0.0
  %815 = vmatprep.subr.mxu0 0.0
  %816 = vmatpush1.msra.mxu0 0.0
  %817 = vmatprep.subr.mxu0 0.0
  %818 = vmatpush1.msra.mxu0 0.0
  %819 = vmatprep.subr.mxu0 0.0
  %820 = vmatpush1.msra.mxu0 0.0
  %821 = vmatprep.subr.mxu0 0.0
  %822 = vmatpush1.msra.mxu0 0.0
  %823 = vmatprep.subr.mxu0 0.0
  %824 = vmatpush1.msra.mxu0 0.0
  %825 = vmatprep.subr.mxu0 0.0
  %826 = vmatpush1.msra.mxu0 0.0
  %827 = vmatprep.subr.mxu0 0.0
  %828 = vmatpush1.msra.mxu0 0.0
  %829 = vmatprep.subr.mxu0 0.0
  %830 = vmatpush1.msra.mxu0 %v802
  %831 = vmatprep.subr.mxu0 0.0
  %832 = vmatpush1.msra.mxu0 %v801
  %833 = vmatprep.subr.mxu0 0.0
  %834 = vmatpush1.msra.mxu0 %v800
  %835 = vmatprep.subr.mxu0 0.0
  %836 = vmatpush1.msra.mxu0 %v799
  %837 = vmatprep.subr.mxu0 0.0
  %838 = vmatpush2.msra.mxu0 0.0
  %839 = vmatprep.subr.mxu0 0.0
  %840 = vmatpush2.msra.mxu0 0.0
  %841 = vmatprep.subr.mxu0 0.0
  %842 = vmatpush2.msra.mxu0 0.0
  %843 = vmatprep.subr.mxu0 0.0
  %844 = vmatpush2.msra.mxu0 0.0
  %845 = vmatprep.subr.mxu0 0.0
  %846 = vmatpush2.msra.mxu0 0.0
  %847 = vmatprep.subr.mxu0 0.0
  %848 = vmatpush2.msra.mxu0 0.0
  %849 = vmatprep.subr.mxu0 0.0
  %850 = vmatpush2.msra.mxu0 0.0
  %851 = vmatprep.subr.mxu0 0.0
  %852 = vmatpush2.msra.mxu0 0.0
  %853 = vmatprep.subr.mxu0 0.0
  %854 = vmatpush2.msra.mxu0 0.0
  %855 = vmatprep.subr.mxu0 0.0
  %856 = vmatpush2.msra.mxu0 0.0
  %857 = vmatprep.subr.mxu0 0.0
  %858 = vmatpush2.msra.mxu0 0.0
  %859 = vmatprep.subr.mxu0 0.0
  %860 = vmatpush2.msra.mxu0 0.0
  %861 = vmatprep.subr.mxu0 0.0
  %862 = vmatpush2.msra.mxu0 0.0
  %863 = vmatprep.subr.mxu0 0.0
  %864 = vmatpush2.msra.mxu0 0.0
  %865 = vmatprep.subr.mxu0 0.0
  %866 = vmatpush2.msra.mxu0 0.0
  %867 = vmatprep.subr.mxu0 0.0
  %868 = vmatpush2.msra.mxu0 0.0
  %869 = vmatprep.mubr.f32.mxu0 0.0
  %870 = vmatmul.mubr.f32.gmra.mxu0 %v803
  %v871 = vpop.f32.mrf.mxu0
  %v872 = vadd.f32 0.0, %v871
  %v873 = vpop.f32.mrf.mxu0
  %874 = vdwg.mxu0
  %v876 = vsel %vm47, %v794, 0
  %878 = vmatprep.subr.mxu0 0.0
  %879 = vmatpush1.msra.mxu0 0.0
  %880 = vmatprep.subr.mxu0 0.0
  %881 = vmatpush1.msra.mxu0 0.0
  %882 = vmatprep.subr.mxu0 0.0
  %883 = vmatpush1.msra.mxu0 0.0
  %884 = vmatprep.subr.mxu0 0.0
  %885 = vmatpush1.msra.mxu0 0.0
  %886 = vmatprep.subr.mxu0 0.0
  %887 = vmatpush1.msra.mxu0 0.0
  %888 = vmatprep.subr.mxu0 0.0
  %889 = vmatpush1.msra.mxu0 0.0
  %890 = vmatprep.subr.mxu0 0.0
  %891 = vmatpush1.msra.mxu0 0.0
  %892 = vmatprep.subr.mxu0 0.0
  %893 = vmatpush1.msra.mxu0 0.0
  %894 = vmatprep.subr.mxu0 0.0
  %895 = vmatpush1.msra.mxu0 0.0
  %896 = vmatprep.subr.mxu0 0.0
  %897 = vmatpush1.msra.mxu0 0.0
  %898 = vmatprep.subr.mxu0 0.0
  %899 = vmatpush1.msra.mxu0 0.0
  %900 = vmatprep.subr.mxu0 0.0
  %901 = vmatpush1.msra.mxu0 0.0
  %902 = vmatprep.subr.mxu0 0.0
  %903 = vmatpush1.msra.mxu0 %v798
  %904 = vmatprep.subr.mxu0 0.0
  %905 = vmatpush1.msra.mxu0 %v797
  %906 = vmatprep.subr.mxu0 0.0
  %907 = vmatpush1.msra.mxu0 %v796
  %908 = vmatprep.subr.mxu0 0.0
  %909 = vmatpush1.msra.mxu0 %v795
  %910 = vmatprep.subr.mxu0 0.0
  %911 = vmatpush2.msra.mxu0 0.0
  %912 = vmatprep.subr.mxu0 0.0
  %913 = vmatpush2.msra.mxu0 0.0
  %914 = vmatprep.subr.mxu0 0.0
  %915 = vmatpush2.msra.mxu0 0.0
  %916 = vmatprep.subr.mxu0 0.0
  %917 = vmatpush2.msra.mxu0 0.0
  %918 = vmatprep.subr.mxu0 0.0
  %919 = vmatpush2.msra.mxu0 0.0
  %920 = vmatprep.subr.mxu0 0.0
  %921 = vmatpush2.msra.mxu0 0.0
  %922 = vmatprep.subr.mxu0 0.0
  %923 = vmatpush2.msra.mxu0 0.0
  %924 = vmatprep.subr.mxu0 0.0
  %925 = vmatpush2.msra.mxu0 0.0
  %926 = vmatprep.subr.mxu0 0.0
  %927 = vmatpush2.msra.mxu0 0.0
  %928 = vmatprep.subr.mxu0 0.0
  %929 = vmatpush2.msra.mxu0 0.0
  %930 = vmatprep.subr.mxu0 0.0
  %931 = vmatpush2.msra.mxu0 0.0
  %932 = vmatprep.subr.mxu0 0.0
  %933 = vmatpush2.msra.mxu0 0.0
  %934 = vmatprep.subr.mxu0 0.0
  %935 = vmatpush2.msra.mxu0 0.0
  %936 = vmatprep.subr.mxu0 0.0
  %937 = vmatpush2.msra.mxu0 0.0
  %938 = vmatprep.subr.mxu0 0.0
  %939 = vmatpush2.msra.mxu0 0.0
  %940 = vmatprep.subr.mxu0 0.0
  %941 = vmatpush2.msra.mxu0 0.0
  %942 = vmatprep.mubr.f32.mxu0 0.0
  %943 = vmatmul.mubr.f32.gmra.mxu0 %v876
  %v944 = vpop.f32.mrf.mxu0
  %v945 = vadd.f32 %v872, %v944
  %v946 = vpop.f32.mrf.mxu0
  %947 = vdwg.mxu0
  %v948 = vadd.f32 %v945, %v198
  %v949 = vxor.u32 %v948, 2147483648
  %v950 = vmul.f32 %v949, 1.442695
  %v951 = vpow.pop %v950
  %v952 = vadd.f32 %v951, 1.0
  %v953 = vrcp.pop %v952
  %v954 = vmul.f32 1.0, %v953
  %v955 = vtanh.pop %v948
  %v956 = vmul.f32 %v954, %v780
  %958 = vrot.lane.b32.xlu0 %v955, 64
  %v959 = vpop.permute.xlu0 %958
  %v961 = vmul.f32 %v954, %v959
  %963 = vrot.lane.b32.xlu0 %v961, 32
  %v964 = vpop.permute.xlu0 %963
  %v966 = vadd.f32 %v956, %v964
  %v967 = vtanh.pop %v966
  %969 = vrot.lane.b32.xlu0 %v967, 64
  %v970 = vpop.permute.xlu0 %969
  %v972 = vmul.f32 %v954, %v970
  %974 = vrot.lane.b32.xlu0 %v972, 32
  %v975 = vpop.permute.xlu0 %974
  %s977 = scalar_lea.vmem %s6, 8
  %978 = vst.msk [vmem:[%s977] sm:$0x3] %vm233, %v975
  %s979 = scalar_lea.vmem %s0, 10
  %v980 = vld [vmem:[%s979] sm:$0x3]
  %v981 = vld [vmem:[%s1] sm:$0xff]
  %v982 = vld [vmem:[%s1 + $0x8] sm:$0xff]
  %v983 = vld [vmem:[%s1 + $0x10] sm:$0xff]
  %v984 = vld [vmem:[%s1 + $0x18] sm:$0xff]
  %v985 = vld [vmem:[%s2] sm:$0xff]
  %v986 = vld [vmem:[%s2 + $0x8] sm:$0xff]
  %v987 = vld [vmem:[%s2 + $0x10] sm:$0xff]
  %v988 = vld [vmem:[%s2 + $0x18] sm:$0xff]
  %v989 = vsel %vm47, %v975, 0
  %991 = vmatprep.subr.mxu0 0.0
  %992 = vmatpush1.msra.mxu0 0.0
  %993 = vmatprep.subr.mxu0 0.0
  %994 = vmatpush1.msra.mxu0 0.0
  %995 = vmatprep.subr.mxu0 0.0
  %996 = vmatpush1.msra.mxu0 0.0
  %997 = vmatprep.subr.mxu0 0.0
  %998 = vmatpush1.msra.mxu0 0.0
  %999 = vmatprep.subr.mxu0 0.0
  %1000 = vmatpush1.msra.mxu0 0.0
  %1001 = vmatprep.subr.mxu0 0.0
  %1002 = vmatpush1.msra.mxu0 0.0
  %1003 = vmatprep.subr.mxu0 0.0
  %1004 = vmatpush1.msra.mxu0 0.0
  %1005 = vmatprep.subr.mxu0 0.0
  %1006 = vmatpush1.msra.mxu0 0.0
  %1007 = vmatprep.subr.mxu0 0.0
  %1008 = vmatpush1.msra.mxu0 0.0
  %1009 = vmatprep.subr.mxu0 0.0
  %1010 = vmatpush1.msra.mxu0 0.0
  %1011 = vmatprep.subr.mxu0 0.0
  %1012 = vmatpush1.msra.mxu0 0.0
  %1013 = vmatprep.subr.mxu0 0.0
  %1014 = vmatpush1.msra.mxu0 0.0
  %1015 = vmatprep.subr.mxu0 0.0
  %1016 = vmatpush1.msra.mxu0 %v988
  %1017 = vmatprep.subr.mxu0 0.0
  %1018 = vmatpush1.msra.mxu0 %v987
  %1019 = vmatprep.subr.mxu0 0.0
  %1020 = vmatpush1.msra.mxu0 %v986
  %1021 = vmatprep.subr.mxu0 0.0
  %1022 = vmatpush1.msra.mxu0 %v985
  %1023 = vmatprep.subr.mxu0 0.0
  %1024 = vmatpush2.msra.mxu0 0.0
  %1025 = vmatprep.subr.mxu0 0.0
  %1026 = vmatpush2.msra.mxu0 0.0
  %1027 = vmatprep.subr.mxu0 0.0
  %1028 = vmatpush2.msra.mxu0 0.0
  %1029 = vmatprep.subr.mxu0 0.0
  %1030 = vmatpush2.msra.mxu0 0.0
  %1031 = vmatprep.subr.mxu0 0.0
  %1032 = vmatpush2.msra.mxu0 0.0
  %1033 = vmatprep.subr.mxu0 0.0
  %1034 = vmatpush2.msra.mxu0 0.0
  %1035 = vmatprep.subr.mxu0 0.0
  %1036 = vmatpush2.msra.mxu0 0.0
  %1037 = vmatprep.subr.mxu0 0.0
  %1038 = vmatpush2.msra.mxu0 0.0
  %1039 = vmatprep.subr.mxu0 0.0
  %1040 = vmatpush2.msra.mxu0 0.0
  %1041 = vmatprep.subr.mxu0 0.0
  %1042 = vmatpush2.msra.mxu0 0.0
  %1043 = vmatprep.subr.mxu0 0.0
  %1044 = vmatpush2.msra.mxu0 0.0
  %1045 = vmatprep.subr.mxu0 0.0
  %1046 = vmatpush2.msra.mxu0 0.0
  %1047 = vmatprep.subr.mxu0 0.0
  %1048 = vmatpush2.msra.mxu0 0.0
  %1049 = vmatprep.subr.mxu0 0.0
  %1050 = vmatpush2.msra.mxu0 0.0
  %1051 = vmatprep.subr.mxu0 0.0
  %1052 = vmatpush2.msra.mxu0 0.0
  %1053 = vmatprep.subr.mxu0 0.0
  %1054 = vmatpush2.msra.mxu0 0.0
  %1055 = vmatprep.mubr.f32.mxu0 0.0
  %1056 = vmatmul.mubr.f32.gmra.mxu0 %v989
  %v1057 = vpop.f32.mrf.mxu0
  %v1058 = vadd.f32 0.0, %v1057
  %v1059 = vpop.f32.mrf.mxu0
  %1060 = vdwg.mxu0
  %v1062 = vsel %vm47, %v980, 0
  %1064 = vmatprep.subr.mxu0 0.0
  %1065 = vmatpush1.msra.mxu0 0.0
  %1066 = vmatprep.subr.mxu0 0.0
  %1067 = vmatpush1.msra.mxu0 0.0
  %1068 = vmatprep.subr.mxu0 0.0
  %1069 = vmatpush1.msra.mxu0 0.0
  %1070 = vmatprep.subr.mxu0 0.0
  %1071 = vmatpush1.msra.mxu0 0.0
  %1072 = vmatprep.subr.mxu0 0.0
  %1073 = vmatpush1.msra.mxu0 0.0
  %1074 = vmatprep.subr.mxu0 0.0
  %1075 = vmatpush1.msra.mxu0 0.0
  %1076 = vmatprep.subr.mxu0 0.0
  %1077 = vmatpush1.msra.mxu0 0.0
  %1078 = vmatprep.subr.mxu0 0.0
  %1079 = vmatpush1.msra.mxu0 0.0
  %1080 = vmatprep.subr.mxu0 0.0
  %1081 = vmatpush1.msra.mxu0 0.0
  %1082 = vmatprep.subr.mxu0 0.0
  %1083 = vmatpush1.msra.mxu0 0.0
  %1084 = vmatprep.subr.mxu0 0.0
  %1085 = vmatpush1.msra.mxu0 0.0
  %1086 = vmatprep.subr.mxu0 0.0
  %1087 = vmatpush1.msra.mxu0 0.0
  %1088 = vmatprep.subr.mxu0 0.0
  %1089 = vmatpush1.msra.mxu0 %v984
  %1090 = vmatprep.subr.mxu0 0.0
  %1091 = vmatpush1.msra.mxu0 %v983
  %1092 = vmatprep.subr.mxu0 0.0
  %1093 = vmatpush1.msra.mxu0 %v982
  %1094 = vmatprep.subr.mxu0 0.0
  %1095 = vmatpush1.msra.mxu0 %v981
  %1096 = vmatprep.subr.mxu0 0.0
  %1097 = vmatpush2.msra.mxu0 0.0
  %1098 = vmatprep.subr.mxu0 0.0
  %1099 = vmatpush2.msra.mxu0 0.0
  %1100 = vmatprep.subr.mxu0 0.0
  %1101 = vmatpush2.msra.mxu0 0.0
  %1102 = vmatprep.subr.mxu0 0.0
  %1103 = vmatpush2.msra.mxu0 0.0
  %1104 = vmatprep.subr.mxu0 0.0
  %1105 = vmatpush2.msra.mxu0 0.0
  %1106 = vmatprep.subr.mxu0 0.0
  %1107 = vmatpush2.msra.mxu0 0.0
  %1108 = vmatprep.subr.mxu0 0.0
  %1109 = vmatpush2.msra.mxu0 0.0
  %1110 = vmatprep.subr.mxu0 0.0
  %1111 = vmatpush2.msra.mxu0 0.0
  %1112 = vmatprep.subr.mxu0 0.0
  %1113 = vmatpush2.msra.mxu0 0.0
  %1114 = vmatprep.subr.mxu0 0.0
  %1115 = vmatpush2.msra.mxu0 0.0
  %1116 = vmatprep.subr.mxu0 0.0
  %1117 = vmatpush2.msra.mxu0 0.0
  %1118 = vmatprep.subr.mxu0 0.0
  %1119 = vmatpush2.msra.mxu0 0.0
  %1120 = vmatprep.subr.mxu0 0.0
  %1121 = vmatpush2.msra.mxu0 0.0
  %1122 = vmatprep.subr.mxu0 0.0
  %1123 = vmatpush2.msra.mxu0 0.0
  %1124 = vmatprep.subr.mxu0 0.0
  %1125 = vmatpush2.msra.mxu0 0.0
  %1126 = vmatprep.subr.mxu0 0.0
  %1127 = vmatpush2.msra.mxu0 0.0
  %1128 = vmatprep.mubr.f32.mxu0 0.0
  %1129 = vmatmul.mubr.f32.gmra.mxu0 %v1062
  %v1130 = vpop.f32.mrf.mxu0
  %v1131 = vadd.f32 %v1058, %v1130
  %v1132 = vpop.f32.mrf.mxu0
  %1133 = vdwg.mxu0
  %v1134 = vadd.f32 %v1131, %v198
  %v1135 = vxor.u32 %v1134, 2147483648
  %v1136 = vmul.f32 %v1135, 1.442695
  %v1137 = vpow.pop %v1136
  %v1138 = vadd.f32 %v1137, 1.0
  %v1139 = vrcp.pop %v1138
  %v1140 = vmul.f32 1.0, %v1139
  %v1141 = vtanh.pop %v1134
  %v1142 = vmul.f32 %v1140, %v966
  %1144 = vrot.lane.b32.xlu0 %v1141, 64
  %v1145 = vpop.permute.xlu0 %1144
  %v1147 = vmul.f32 %v1140, %v1145
  %1149 = vrot.lane.b32.xlu0 %v1147, 32
  %v1150 = vpop.permute.xlu0 %1149
  %v1152 = vadd.f32 %v1142, %v1150
  %v1153 = vtanh.pop %v1152
  %1155 = vrot.lane.b32.xlu0 %v1153, 64
  %v1156 = vpop.permute.xlu0 %1155
  %v1158 = vmul.f32 %v1140, %v1156
  %1160 = vrot.lane.b32.xlu0 %v1158, 32
  %v1161 = vpop.permute.xlu0 %1160
  %s1163 = scalar_lea.vmem %s6, 10
  %1164 = vst.msk [vmem:[%s1163] sm:$0x3] %vm233, %v1161
  %s1165 = scalar_lea.vmem %s0, 12
  %v1166 = vld [vmem:[%s1165] sm:$0x3]
  %v1167 = vld [vmem:[%s1] sm:$0xff]
  %v1168 = vld [vmem:[%s1 + $0x8] sm:$0xff]
  %v1169 = vld [vmem:[%s1 + $0x10] sm:$0xff]
  %v1170 = vld [vmem:[%s1 + $0x18] sm:$0xff]
  %v1171 = vld [vmem:[%s2] sm:$0xff]
  %v1172 = vld [vmem:[%s2 + $0x8] sm:$0xff]
  %v1173 = vld [vmem:[%s2 + $0x10] sm:$0xff]
  %v1174 = vld [vmem:[%s2 + $0x18] sm:$0xff]
  %v1175 = vsel %vm47, %v1161, 0
  %1177 = vmatprep.subr.mxu0 0.0
  %1178 = vmatpush1.msra.mxu0 0.0
  %1179 = vmatprep.subr.mxu0 0.0
  %1180 = vmatpush1.msra.mxu0 0.0
  %1181 = vmatprep.subr.mxu0 0.0
  %1182 = vmatpush1.msra.mxu0 0.0
  %1183 = vmatprep.subr.mxu0 0.0
  %1184 = vmatpush1.msra.mxu0 0.0
  %1185 = vmatprep.subr.mxu0 0.0
  %1186 = vmatpush1.msra.mxu0 0.0
  %1187 = vmatprep.subr.mxu0 0.0
  %1188 = vmatpush1.msra.mxu0 0.0
  %1189 = vmatprep.subr.mxu0 0.0
  %1190 = vmatpush1.msra.mxu0 0.0
  %1191 = vmatprep.subr.mxu0 0.0
  %1192 = vmatpush1.msra.mxu0 0.0
  %1193 = vmatprep.subr.mxu0 0.0
  %1194 = vmatpush1.msra.mxu0 0.0
  %1195 = vmatprep.subr.mxu0 0.0
  %1196 = vmatpush1.msra.mxu0 0.0
  %1197 = vmatprep.subr.mxu0 0.0
  %1198 = vmatpush1.msra.mxu0 0.0
  %1199 = vmatprep.subr.mxu0 0.0
  %1200 = vmatpush1.msra.mxu0 0.0
  %1201 = vmatprep.subr.mxu0 0.0
  %1202 = vmatpush1.msra.mxu0 %v1174
  %1203 = vmatprep.subr.mxu0 0.0
  %1204 = vmatpush1.msra.mxu0 %v1173
  %1205 = vmatprep.subr.mxu0 0.0
  %1206 = vmatpush1.msra.mxu0 %v1172
  %1207 = vmatprep.subr.mxu0 0.0
  %1208 = vmatpush1.msra.mxu0 %v1171
  %1209 = vmatprep.subr.mxu0 0.0
  %1210 = vmatpush2.msra.mxu0 0.0
  %1211 = vmatprep.subr.mxu0 0.0
  %1212 = vmatpush2.msra.mxu0 0.0
  %1213 = vmatprep.subr.mxu0 0.0
  %1214 = vmatpush2.msra.mxu0 0.0
  %1215 = vmatprep.subr.mxu0 0.0
  %1216 = vmatpush2.msra.mxu0 0.0
  %1217 = vmatprep.subr.mxu0 0.0
  %1218 = vmatpush2.msra.mxu0 0.0
  %1219 = vmatprep.subr.mxu0 0.0
  %1220 = vmatpush2.msra.mxu0 0.0
  %1221 = vmatprep.subr.mxu0 0.0
  %1222 = vmatpush2.msra.mxu0 0.0
  %1223 = vmatprep.subr.mxu0 0.0
  %1224 = vmatpush2.msra.mxu0 0.0
  %1225 = vmatprep.subr.mxu0 0.0
  %1226 = vmatpush2.msra.mxu0 0.0
  %1227 = vmatprep.subr.mxu0 0.0
  %1228 = vmatpush2.msra.mxu0 0.0
  %1229 = vmatprep.subr.mxu0 0.0
  %1230 = vmatpush2.msra.mxu0 0.0
  %1231 = vmatprep.subr.mxu0 0.0
  %1232 = vmatpush2.msra.mxu0 0.0
  %1233 = vmatprep.subr.mxu0 0.0
  %1234 = vmatpush2.msra.mxu0 0.0
  %1235 = vmatprep.subr.mxu0 0.0
  %1236 = vmatpush2.msra.mxu0 0.0
  %1237 = vmatprep.subr.mxu0 0.0
  %1238 = vmatpush2.msra.mxu0 0.0
  %1239 = vmatprep.subr.mxu0 0.0
  %1240 = vmatpush2.msra.mxu0 0.0
  %1241 = vmatprep.mubr.f32.mxu0 0.0
  %1242 = vmatmul.mubr.f32.gmra.mxu0 %v1175
  %v1243 = vpop.f32.mrf.mxu0
  %v1244 = vadd.f32 0.0, %v1243
  %v1245 = vpop.f32.mrf.mxu0
  %1246 = vdwg.mxu0
  %v1248 = vsel %vm47, %v1166, 0
  %1250 = vmatprep.subr.mxu0 0.0
  %1251 = vmatpush1.msra.mxu0 0.0
  %1252 = vmatprep.subr.mxu0 0.0
  %1253 = vmatpush1.msra.mxu0 0.0
  %1254 = vmatprep.subr.mxu0 0.0
  %1255 = vmatpush1.msra.mxu0 0.0
  %1256 = vmatprep.subr.mxu0 0.0
  %1257 = vmatpush1.msra.mxu0 0.0
  %1258 = vmatprep.subr.mxu0 0.0
  %1259 = vmatpush1.msra.mxu0 0.0
  %1260 = vmatprep.subr.mxu0 0.0
  %1261 = vmatpush1.msra.mxu0 0.0
  %1262 = vmatprep.subr.mxu0 0.0
  %1263 = vmatpush1.msra.mxu0 0.0
  %1264 = vmatprep.subr.mxu0 0.0
  %1265 = vmatpush1.msra.mxu0 0.0
  %1266 = vmatprep.subr.mxu0 0.0
  %1267 = vmatpush1.msra.mxu0 0.0
  %1268 = vmatprep.subr.mxu0 0.0
  %1269 = vmatpush1.msra.mxu0 0.0
  %1270 = vmatprep.subr.mxu0 0.0
  %1271 = vmatpush1.msra.mxu0 0.0
  %1272 = vmatprep.subr.mxu0 0.0
  %1273 = vmatpush1.msra.mxu0 0.0
  %1274 = vmatprep.subr.mxu0 0.0
  %1275 = vmatpush1.msra.mxu0 %v1170
  %1276 = vmatprep.subr.mxu0 0.0
  %1277 = vmatpush1.msra.mxu0 %v1169
  %1278 = vmatprep.subr.mxu0 0.0
  %1279 = vmatpush1.msra.mxu0 %v1168
  %1280 = vmatprep.subr.mxu0 0.0
  %1281 = vmatpush1.msra.mxu0 %v1167
  %1282 = vmatprep.subr.mxu0 0.0
  %1283 = vmatpush2.msra.mxu0 0.0
  %1284 = vmatprep.subr.mxu0 0.0
  %1285 = vmatpush2.msra.mxu0 0.0
  %1286 = vmatprep.subr.mxu0 0.0
  %1287 = vmatpush2.msra.mxu0 0.0
  %1288 = vmatprep.subr.mxu0 0.0
  %1289 = vmatpush2.msra.mxu0 0.0
  %1290 = vmatprep.subr.mxu0 0.0
  %1291 = vmatpush2.msra.mxu0 0.0
  %1292 = vmatprep.subr.mxu0 0.0
  %1293 = vmatpush2.msra.mxu0 0.0
  %1294 = vmatprep.subr.mxu0 0.0
  %1295 = vmatpush2.msra.mxu0 0.0
  %1296 = vmatprep.subr.mxu0 0.0
  %1297 = vmatpush2.msra.mxu0 0.0
  %1298 = vmatprep.subr.mxu0 0.0
  %1299 = vmatpush2.msra.mxu0 0.0
  %1300 = vmatprep.subr.mxu0 0.0
  %1301 = vmatpush2.msra.mxu0 0.0
  %1302 = vmatprep.subr.mxu0 0.0
  %1303 = vmatpush2.msra.mxu0 0.0
  %1304 = vmatprep.subr.mxu0 0.0
  %1305 = vmatpush2.msra.mxu0 0.0
  %1306 = vmatprep.subr.mxu0 0.0
  %1307 = vmatpush2.msra.mxu0 0.0
  %1308 = vmatprep.subr.mxu0 0.0
  %1309 = vmatpush2.msra.mxu0 0.0
  %1310 = vmatprep.subr.mxu0 0.0
  %1311 = vmatpush2.msra.mxu0 0.0
  %1312 = vmatprep.subr.mxu0 0.0
  %1313 = vmatpush2.msra.mxu0 0.0
  %1314 = vmatprep.mubr.f32.mxu0 0.0
  %1315 = vmatmul.mubr.f32.gmra.mxu0 %v1248
  %v1316 = vpop.f32.mrf.mxu0
  %v1317 = vadd.f32 %v1244, %v1316
  %v1318 = vpop.f32.mrf.mxu0
  %1319 = vdwg.mxu0
  %v1320 = vadd.f32 %v1317, %v198
  %v1321 = vxor.u32 %v1320, 2147483648
  %v1322 = vmul.f32 %v1321, 1.442695
  %v1323 = vpow.pop %v1322
  %v1324 = vadd.f32 %v1323, 1.0
  %v1325 = vrcp.pop %v1324
  %v1326 = vmul.f32 1.0, %v1325
  %v1327 = vtanh.pop %v1320
  %v1328 = vmul.f32 %v1326, %v1152
  %1330 = vrot.lane.b32.xlu0 %v1327, 64
  %v1331 = vpop.permute.xlu0 %1330
  %v1333 = vmul.f32 %v1326, %v1331
  %1335 = vrot.lane.b32.xlu0 %v1333, 32
  %v1336 = vpop.permute.xlu0 %1335
  %v1338 = vadd.f32 %v1328, %v1336
  %v1339 = vtanh.pop %v1338
  %1341 = vrot.lane.b32.xlu0 %v1339, 64
  %v1342 = vpop.permute.xlu0 %1341
  %v1344 = vmul.f32 %v1326, %v1342
  %1346 = vrot.lane.b32.xlu0 %v1344, 32
  %v1347 = vpop.permute.xlu0 %1346
  %s1349 = scalar_lea.vmem %s6, 12
  %1350 = vst.msk [vmem:[%s1349] sm:$0x3] %vm233, %v1347
  %s1351 = scalar_lea.vmem %s0, 14
  %v1352 = vld [vmem:[%s1351] sm:$0x3]
  %v1353 = vld [vmem:[%s1] sm:$0xff]
  %v1354 = vld [vmem:[%s1 + $0x8] sm:$0xff]
  %v1355 = vld [vmem:[%s1 + $0x10] sm:$0xff]
  %v1356 = vld [vmem:[%s1 + $0x18] sm:$0xff]
  %v1357 = vld [vmem:[%s2] sm:$0xff]
  %v1358 = vld [vmem:[%s2 + $0x8] sm:$0xff]
  %v1359 = vld [vmem:[%s2 + $0x10] sm:$0xff]
  %v1360 = vld [vmem:[%s2 + $0x18] sm:$0xff]
  %v1361 = vsel %vm47, %v1347, 0
  %1363 = vmatprep.subr.mxu0 0.0
  %1364 = vmatpush1.msra.mxu0 0.0
  %1365 = vmatprep.subr.mxu0 0.0
  %1366 = vmatpush1.msra.mxu0 0.0
  %1367 = vmatprep.subr.mxu0 0.0
  %1368 = vmatpush1.msra.mxu0 0.0
  %1369 = vmatprep.subr.mxu0 0.0
  %1370 = vmatpush1.msra.mxu0 0.0
  %1371 = vmatprep.subr.mxu0 0.0
  %1372 = vmatpush1.msra.mxu0 0.0
  %1373 = vmatprep.subr.mxu0 0.0
  %1374 = vmatpush1.msra.mxu0 0.0
  %1375 = vmatprep.subr.mxu0 0.0
  %1376 = vmatpush1.msra.mxu0 0.0
  %1377 = vmatprep.subr.mxu0 0.0
  %1378 = vmatpush1.msra.mxu0 0.0
  %1379 = vmatprep.subr.mxu0 0.0
  %1380 = vmatpush1.msra.mxu0 0.0
  %1381 = vmatprep.subr.mxu0 0.0
  %1382 = vmatpush1.msra.mxu0 0.0
  %1383 = vmatprep.subr.mxu0 0.0
  %1384 = vmatpush1.msra.mxu0 0.0
  %1385 = vmatprep.subr.mxu0 0.0
  %1386 = vmatpush1.msra.mxu0 0.0
  %1387 = vmatprep.subr.mxu0 0.0
  %1388 = vmatpush1.msra.mxu0 %v1360
  %1389 = vmatprep.subr.mxu0 0.0
  %1390 = vmatpush1.msra.mxu0 %v1359
  %1391 = vmatprep.subr.mxu0 0.0
  %1392 = vmatpush1.msra.mxu0 %v1358
  %1393 = vmatprep.subr.mxu0 0.0
  %1394 = vmatpush1.msra.mxu0 %v1357
  %1395 = vmatprep.subr.mxu0 0.0
  %1396 = vmatpush2.msra.mxu0 0.0
  %1397 = vmatprep.subr.mxu0 0.0
  %1398 = vmatpush2.msra.mxu0 0.0
  %1399 = vmatprep.subr.mxu0 0.0
  %1400 = vmatpush2.msra.mxu0 0.0
  %1401 = vmatprep.subr.mxu0 0.0
  %1402 = vmatpush2.msra.mxu0 0.0
  %1403 = vmatprep.subr.mxu0 0.0
  %1404 = vmatpush2.msra.mxu0 0.0
  %1405 = vmatprep.subr.mxu0 0.0
  %1406 = vmatpush2.msra.mxu0 0.0
  %1407 = vmatprep.subr.mxu0 0.0
  %1408 = vmatpush2.msra.mxu0 0.0
  %1409 = vmatprep.subr.mxu0 0.0
  %1410 = vmatpush2.msra.mxu0 0.0
  %1411 = vmatprep.subr.mxu0 0.0
  %1412 = vmatpush2.msra.mxu0 0.0
  %1413 = vmatprep.subr.mxu0 0.0
  %1414 = vmatpush2.msra.mxu0 0.0
  %1415 = vmatprep.subr.mxu0 0.0
  %1416 = vmatpush2.msra.mxu0 0.0
  %1417 = vmatprep.subr.mxu0 0.0
  %1418 = vmatpush2.msra.mxu0 0.0
  %1419 = vmatprep.subr.mxu0 0.0
  %1420 = vmatpush2.msra.mxu0 0.0
  %1421 = vmatprep.subr.mxu0 0.0
  %1422 = vmatpush2.msra.mxu0 0.0
  %1423 = vmatprep.subr.mxu0 0.0
  %1424 = vmatpush2.msra.mxu0 0.0
  %1425 = vmatprep.subr.mxu0 0.0
  %1426 = vmatpush2.msra.mxu0 0.0
  %1427 = vmatprep.mubr.f32.mxu0 0.0
  %1428 = vmatmul.mubr.f32.gmra.mxu0 %v1361
  %v1429 = vpop.f32.mrf.mxu0
  %v1430 = vadd.f32 0.0, %v1429
  %v1431 = vpop.f32.mrf.mxu0
  %1432 = vdwg.mxu0
  %v1434 = vsel %vm47, %v1352, 0
  %1436 = vmatprep.subr.mxu0 0.0
  %1437 = vmatpush1.msra.mxu0 0.0
  %1438 = vmatprep.subr.mxu0 0.0
  %1439 = vmatpush1.msra.mxu0 0.0
  %1440 = vmatprep.subr.mxu0 0.0
  %1441 = vmatpush1.msra.mxu0 0.0
  %1442 = vmatprep.subr.mxu0 0.0
  %1443 = vmatpush1.msra.mxu0 0.0
  %1444 = vmatprep.subr.mxu0 0.0
  %1445 = vmatpush1.msra.mxu0 0.0
  %1446 = vmatprep.subr.mxu0 0.0
  %1447 = vmatpush1.msra.mxu0 0.0
  %1448 = vmatprep.subr.mxu0 0.0
  %1449 = vmatpush1.msra.mxu0 0.0
  %1450 = vmatprep.subr.mxu0 0.0
  %1451 = vmatpush1.msra.mxu0 0.0
  %1452 = vmatprep.subr.mxu0 0.0
  %1453 = vmatpush1.msra.mxu0 0.0
  %1454 = vmatprep.subr.mxu0 0.0
  %1455 = vmatpush1.msra.mxu0 0.0
  %1456 = vmatprep.subr.mxu0 0.0
  %1457 = vmatpush1.msra.mxu0 0.0
  %1458 = vmatprep.subr.mxu0 0.0
  %1459 = vmatpush1.msra.mxu0 0.0
  %1460 = vmatprep.subr.mxu0 0.0
  %1461 = vmatpush1.msra.mxu0 %v1356
  %1462 = vmatprep.subr.mxu0 0.0
  %1463 = vmatpush1.msra.mxu0 %v1355
  %1464 = vmatprep.subr.mxu0 0.0
  %1465 = vmatpush1.msra.mxu0 %v1354
  %1466 = vmatprep.subr.mxu0 0.0
  %1467 = vmatpush1.msra.mxu0 %v1353
  %1468 = vmatprep.subr.mxu0 0.0
  %1469 = vmatpush2.msra.mxu0 0.0
  %1470 = vmatprep.subr.mxu0 0.0
  %1471 = vmatpush2.msra.mxu0 0.0
  %1472 = vmatprep.subr.mxu0 0.0
  %1473 = vmatpush2.msra.mxu0 0.0
  %1474 = vmatprep.subr.mxu0 0.0
  %1475 = vmatpush2.msra.mxu0 0.0
  %1476 = vmatprep.subr.mxu0 0.0
  %1477 = vmatpush2.msra.mxu0 0.0
  %1478 = vmatprep.subr.mxu0 0.0
  %1479 = vmatpush2.msra.mxu0 0.0
  %1480 = vmatprep.subr.mxu0 0.0
  %1481 = vmatpush2.msra.mxu0 0.0
  %1482 = vmatprep.subr.mxu0 0.0
  %1483 = vmatpush2.msra.mxu0 0.0
  %1484 = vmatprep.subr.mxu0 0.0
  %1485 = vmatpush2.msra.mxu0 0.0
  %1486 = vmatprep.subr.mxu0 0.0
  %1487 = vmatpush2.msra.mxu0 0.0
  %1488 = vmatprep.subr.mxu0 0.0
  %1489 = vmatpush2.msra.mxu0 0.0
  %1490 = vmatprep.subr.mxu0 0.0
  %1491 = vmatpush2.msra.mxu0 0.0
  %1492 = vmatprep.subr.mxu0 0.0
  %1493 = vmatpush2.msra.mxu0 0.0
  %1494 = vmatprep.subr.mxu0 0.0
  %1495 = vmatpush2.msra.mxu0 0.0
  %1496 = vmatprep.subr.mxu0 0.0
  %1497 = vmatpush2.msra.mxu0 0.0
  %1498 = vmatprep.subr.mxu0 0.0
  %1499 = vmatpush2.msra.mxu0 0.0
  %1500 = vmatprep.mubr.f32.mxu0 0.0
  %1501 = vmatmul.mubr.f32.gmra.mxu0 %v1434
  %v1502 = vpop.f32.mrf.mxu0
  %v1503 = vadd.f32 %v1430, %v1502
  %v1504 = vpop.f32.mrf.mxu0
  %1505 = vdwg.mxu0
  %v1506 = vadd.f32 %v1503, %v198
  %v1507 = vxor.u32 %v1506, 2147483648
  %v1508 = vmul.f32 %v1507, 1.442695
  %v1509 = vpow.pop %v1508
  %v1510 = vadd.f32 %v1509, 1.0
  %v1511 = vrcp.pop %v1510
  %v1512 = vmul.f32 1.0, %v1511
  %v1513 = vtanh.pop %v1506
  %v1514 = vmul.f32 %v1512, %v1338
  %1516 = vrot.lane.b32.xlu0 %v1513, 64
  %v1517 = vpop.permute.xlu0 %1516
  %v1519 = vmul.f32 %v1512, %v1517
  %1521 = vrot.lane.b32.xlu0 %v1519, 32
  %v1522 = vpop.permute.xlu0 %1521
  %v1524 = vadd.f32 %v1514, %v1522
  %v1525 = vtanh.pop %v1524
  %1527 = vrot.lane.b32.xlu0 %v1525, 64
  %v1528 = vpop.permute.xlu0 %1527
  %v1530 = vmul.f32 %v1512, %v1528
  %1532 = vrot.lane.b32.xlu0 %v1530, 32
  %v1533 = vpop.permute.xlu0 %1532
  %s1535 = scalar_lea.vmem %s6, 14
  %1536 = vst.msk [vmem:[%s1535] sm:$0x3] %vm233, %v1533
  %1537 = vst.msk [vmem:[#allocation2] sm:$0x3] %vm233, %v1533
  %1539 = vrot.lane.b32.xlu0 %v1524, 96
  %v1540 = vpop.permute.xlu0 %1539
  %1542 = vst.msk [vmem:[#allocation3] sm:$0x3] %vm233, %v1540
  // Predicated region
  $region30: #{lstm_language_model_forward.3} parent=0 // pred_check
    %p1543 = pneg %p26
  $region31: #{lstm_language_model_forward.3} parent=0 // pred_check_branch
    %1545 = sbr.rel (%p1543) target = $region33
  $region32: #{lstm_language_model_forward.3} parent=0 // pred_region
    %1546 = vst.msk [vmem:[%s7] sm:$0x3] %vm233, %v1533
    %1547 = vst.msk [vmem:[%s8] sm:$0x3] %vm233, %v1540
  $region33: #{lstm_language_model_forward.3} parent=0 // pred_fallthru
    _
  // Predicated region
  $region34: #{lstm_language_model_forward.3} parent=0 // pred_check
    _
  $region35: #{lstm_language_model_forward.3} parent=0 // pred_check_branch
    %1549 = sbr.rel (0) target = $region37
  $region36: #{lstm_language_model_forward.3} parent=0 // pred_region
    _
  $region37: #{lstm_language_model_forward.3} parent=0 // pred_fallthru
    _
  // Predicated region
  $region38: #{lstm_language_model_forward.3} parent=0 // pred_check
    _
  $region39: #{lstm_language_model_forward.3} parent=0 // pred_check_branch
    %1551 = sbr.rel (0) target = $region41
  $region40: #{lstm_language_model_forward.3} parent=0 // pred_region
    _
  $region41: #{lstm_language_model_forward.3} parent=0 // pred_fallthru
    _
  // Predicated region
  $region42: #{lstm_language_model_forward.3} parent=0 // pred_check
    _
  $region43: #{lstm_language_model_forward.3} parent=0 // pred_check_branch
    %1553 = sbr.rel (0) target = $region45
  $region44: #{lstm_language_model_forward.3} parent=0 // pred_region
    _
  $region45: #{lstm_language_model_forward.3} parent=0 // pred_fallthru
    _
  // Predicated region
  $region46: #{lstm_language_model_forward.3} parent=0 // pred_check
    _
  $region47: #{lstm_language_model_forward.3} parent=0 // pred_check_branch
    %1555 = sbr.rel (0) target = $region49
  $region48: #{lstm_language_model_forward.3} parent=0 // pred_region
    _
  $region49: #{lstm_language_model_forward.3} parent=0 // pred_fallthru
    _
  // Predicated region
  $region50: #{lstm_language_model_forward.3} parent=0 // pred_check
    _
  $region51: #{lstm_language_model_forward.3} parent=0 // pred_check_branch
    %1557 = sbr.rel (0) target = $region53
  $region52: #{lstm_language_model_forward.3} parent=0 // pred_region
    _
  $region53: #{lstm_language_model_forward.3} parent=0 // pred_fallthru
    _
  // Predicated region
  $region54: #{lstm_language_model_forward.3} parent=0 // pred_check
    _
  $region55: #{lstm_language_model_forward.3} parent=0 // pred_check_branch
    %1559 = sbr.rel (0) target = $region57
  $region56: #{lstm_language_model_forward.3} parent=0 // pred_region
    _
  $region57: #{lstm_language_model_forward.3} parent=0 // pred_fallthru
    _

</llo_original>
